<compile_context>
chip_gen: v6e
topology: v6e:2x2x1
jax: 0.10.0
libtpu: 0.0.40
codegen_flags: <defaults>
</compile_context>

<pallas_src>
import jax
import jax.numpy as jnp
from jax.experimental import pallas as pl
from jax.experimental.pallas import tpu as pltpu


def _round_up(x, m):
    return ((x + m - 1) // m) * m


def clip_classifier_kernel(img_ref, wenc_ref, text_ref,
                           w1_ref, b1_ref, w2_ref, b2_ref,
                           out_ref, acc_ref):
    k = pl.program_id(0)

    # --- init f32 accumulator on first K step ---
    @pl.when(k == 0)
    def _():
        acc_ref[...] = jnp.zeros_like(acc_ref)

    # --- K-tiled synthetic CLIP image encoder: bf16 (B, tk) @ (tk, 512) ---
    # bf16 operands on the MXU, f32 accumulation.
    acc_ref[...] += jnp.dot(img_ref[...], wenc_ref[...],
                            preferred_element_type=jnp.float32)

    # --- finalize: L2-normalize + text fuse + 2-layer classifier ---
    @pl.when(k == pl.num_programs(0) - 1)
    def _():
        img_feat = acc_ref[...]                                    # f32 (B, 512)
        sq_sum = jnp.sum(img_feat * img_feat, axis=-1, keepdims=True)
        img_feat = img_feat * jax.lax.rsqrt(sq_sum + 1e-12)        # L2 norm
        combined = img_feat * text_ref[...].astype(jnp.float32)    # f32 fuse
        h = jnp.dot(combined.astype(jnp.bfloat16), w1_ref[...],
                    preferred_element_type=jnp.float32) + b1_ref[...]
        h = jnp.maximum(h, 0.0)
        # Dropout(0.5) in eval mode == identity.
        out_ref[...] = jnp.dot(h.astype(jnp.bfloat16), w2_ref[...],
                               preferred_element_type=jnp.float32) + b2_ref[...]


def prepare_params(params, in_pixels, *, tk=4096):
    """One-time (init-time) pad + cast of the frozen weights.

    Returns a dict of TPU-ready operands plus the tiling constants, so the
    per-call wrapper does zero weight re-padding / re-casting.
    """
    FEAT = params["w1"].shape[0]
    NCLS = params["w2"].shape[1]
    N_pad = 128                                         # lane-dense classifier out

    # K tile: multiple of 256 (v6e/v7x MXU), clamped for tiny images.
    tk_eff = min(tk, _round_up(in_pixels, 256))
    K_pad = _round_up(in_pixels, tk_eff)

    # Encoder weight: cast to bf16 first, then pad into a bf16 buffer (no f32
    # padded intermediate, done once because the encoder is frozen).
    wenc_p = (jnp.zeros((K_pad, FEAT), jnp.bfloat16)
              .at[:in_pixels, :].set(params["w_enc"].astype(jnp.bfloat16)))

    w1_bf = params["w1"].astype(jnp.bfloat16)                       # (512, 512)
    b1_f32 = params["b1"].astype(jnp.float32).reshape(1, FEAT)      # (1, 512)
    w2_p = (jnp.zeros((FEAT, N_pad), jnp.bfloat16)
            .at[:, :NCLS].set(params["w2"].astype(jnp.bfloat16)))   # (512, 128)
    b2_p = (jnp.zeros((1, N_pad), jnp.float32)
            .at[:, :NCLS].set(params["b2"].astype(jnp.float32).reshape(1, NCLS)))

    return {
        "wenc": wenc_p, "w1": w1_bf, "b1": b1_f32, "w2": w2_p, "b2": b2_p,
        "tk": tk_eff, "K_pad": K_pad, "FEAT": FEAT, "NCLS": NCLS, "N_pad": N_pad,
        "in_pixels": in_pixels,
    }


def medical_clip_classifier(image_nchw, text_features, prep):
    """image_nchw: (B, C, H, W) f32; text_features: (B, 512) f32 -> (B, 3) f32."""
    B = image_nchw.shape[0]
    FEAT, NCLS, N_pad = prep["FEAT"], prep["NCLS"], prep["N_pad"]
    tk, K_pad, P = prep["tk"], prep["K_pad"], prep["in_pixels"]

    # Glue: flatten NCHW, cast to bf16 BEFORE zero-padding (halves wrapper traffic).
    img_flat = image_nchw.reshape(B, -1).astype(jnp.bfloat16)
    assert img_flat.shape[1] == P

    # Batch padded to a multiple of 16 (bf16 packs sublanes in pairs).
    B_pad = max(16, _round_up(B, 16))

    img_p = (jnp.zeros((B_pad, K_pad), jnp.bfloat16)
             .at[:B, :P].set(img_flat))
    text_p = (jnp.zeros((B_pad, FEAT), jnp.bfloat16)
              .at[:B, :].set(text_features.astype(jnp.bfloat16)))

    num_k = K_pad // tk

    out = pl.pallas_call(
        clip_classifier_kernel,
        out_shape=jax.ShapeDtypeStruct((B_pad, N_pad), jnp.float32),
        grid_spec=pltpu.PrefetchScalarGridSpec(
            num_scalar_prefetch=0,
            grid=(num_k,),
            in_specs=[
                # streamed over K (double-buffered by the pipeline):
                pl.BlockSpec((B_pad, tk), lambda k: (0, k)),      # bf16 image tile
                pl.BlockSpec((tk, FEAT), lambda k: (k, 0)),       # bf16 w_enc tile
                # resident across the K reduction (constant block index):
                pl.BlockSpec((B_pad, FEAT), lambda k: (0, 0)),    # bf16 text feats
                pl.BlockSpec((FEAT, FEAT), lambda k: (0, 0)),     # bf16 w1
                pl.BlockSpec((1, FEAT), lambda k: (0, 0)),        # f32 b1
                pl.BlockSpec((FEAT, N_pad), lambda k: (0, 0)),    # bf16 w2 (padded)
                pl.BlockSpec((1, N_pad), lambda k: (0, 0)),       # f32 b2 (padded)
            ],
            out_specs=pl.BlockSpec((B_pad, N_pad), lambda k: (0, 0)),
            scratch_shapes=[pltpu.VMEM((B_pad, FEAT), jnp.float32)],
        ),
        compiler_params=pltpu.CompilerParams(
            dimension_semantics=("arbitrary",),                   # K is a reduction
            vmem_limit_bytes=48 << 20,                            # fits v7x (64 MiB)
        ),
    )(img_p, prep["wenc"], text_p, prep["w1"], prep["b1"], prep["w2"], prep["b2"])

    return out[:B, :NCLS]


def init_params(key, in_pixels, feat_dim=512, num_classes=3):
    k0, k1, k2, k3, k4 = jax.random.split(key, 5)
    scale = 0.02
    return {
        "w_enc": scale * jax.random.normal(k0, (in_pixels, feat_dim), jnp.float32),
        "w1":    scale * jax.random.normal(k1, (feat_dim, feat_dim), jnp.float32),
        "b1":    scale * jax.random.normal(k2, (1, feat_dim), jnp.float32),
        "w2":    scale * jax.random.normal(k3, (feat_dim, num_classes), jnp.float32),
        "b2":    scale * jax.random.normal(k4, (1, num_classes), jnp.float32),
    }


if __name__ == "__main__":
    key = jax.random.PRNGKey(0)
    k_img, k_txt, k_par = jax.random.split(key, 3)

    B, C, H, W = 2, 3, 16, 16          # small NCHW image, like the PyTorch module
    FEAT = 512                         # CLIP feature dim fixed by the classifier

    image = jax.random.normal(k_img, (B, C, H, W), jnp.float32)
    text_features = jax.random.normal(k_txt, (B, FEAT), jnp.float32)
    params = init_params(k_par, in_pixels=C * H * W, feat_dim=FEAT, num_classes=3)

    # One-time weight prep (pad + bf16 cast of the frozen encoder/classifier).
    prep = prepare_params(params, in_pixels=C * H * W, tk=4096)

    logits = medical_clip_classifier(image, text_features, prep)
    jax.block_until_ready(logits)

    # --- reference in plain JAX, matching the kernel's bf16-operand / f32-acc
    #     MXU paths, to validate the fused kernel end-to-end ---
    img_flat = image.reshape(B, -1)
    img_feat = jnp.dot(img_flat.astype(jnp.bfloat16),
                       params["w_enc"].astype(jnp.bfloat16),
                       preferred_element_type=jnp.float32)
    img_feat = img_feat * jax.lax.rsqrt(
        jnp.sum(img_feat * img_feat, axis=-1, keepdims=True) + 1e-12)
    combined = img_feat * text_features.astype(jnp.bfloat16).astype(jnp.float32)
    h = jnp.dot(combined.astype(jnp.bfloat16), params["w1"].astype(jnp.bfloat16),
                preferred_element_type=jnp.float32) + params["b1"]
    h = jnp.maximum(h, 0.0)
    ref = jnp.dot(h.astype(jnp.bfloat16), params["w2"].astype(jnp.bfloat16),
                  preferred_element_type=jnp.float32) + params["b2"]

    assert logits.shape == (B, 3)
    assert jnp.allclose(logits, ref, atol=2e-3, rtol=2e-3), (
        f"max abs err {jnp.max(jnp.abs(logits - ref))}")

    print("KERNEL_OK")
</pallas_src>

<mosaic_0001>
module attributes {stable_mosaic.version = 11 : i64} {
  func.func @clip_classifier_kernel(%arg0: i32, %arg1: memref<16x768xbf16, #tpu.memory_space<vmem>>, %arg2: memref<768x512xbf16, #tpu.memory_space<vmem>>, %arg3: memref<16x512xbf16, #tpu.memory_space<vmem>>, %arg4: memref<512x512xbf16, #tpu.memory_space<vmem>>, %arg5: memref<1x512xf32, #tpu.memory_space<vmem>>, %arg6: memref<512x128xbf16, #tpu.memory_space<vmem>>, %arg7: memref<1x128xf32, #tpu.memory_space<vmem>>, %arg8: memref<16x128xf32, #tpu.memory_space<vmem>>, %arg9: memref<16x512xf32, #tpu.memory_space<vmem>>) attributes {dimension_semantics = [#tpu.dimension_semantics<arbitrary>], iteration_bounds = array<i64: 1>, scalar_prefetch = 0 : i64, scratch_operands = 1 : i64, tpu.core_type = #tpu.core_type<tc>, window_params = [{transform_indices = @transform_0, window_bounds = array<i64: 16, 768>}, {transform_indices = @transform_1, window_bounds = array<i64: 768, 512>}, {pipeline_mode = #tpu.pipeline_mode<synchronous>, transform_indices = @transform_2, window_bounds = array<i64: 16, 512>}, {pipeline_mode = #tpu.pipeline_mode<synchronous>, transform_indices = @transform_3, window_bounds = array<i64: 512, 512>}, {pipeline_mode = #tpu.pipeline_mode<synchronous>, transform_indices = @transform_4, window_bounds = array<i64: 1, 512>}, {pipeline_mode = #tpu.pipeline_mode<synchronous>, transform_indices = @transform_5, window_bounds = array<i64: 512, 128>}, {pipeline_mode = #tpu.pipeline_mode<synchronous>, transform_indices = @transform_6, window_bounds = array<i64: 1, 128>}, {pipeline_mode = #tpu.pipeline_mode<synchronous>, transform_indices = @transform_7, window_bounds = array<i64: 16, 128>}]} {
    %c0_i32 = arith.constant 0 : i32
    %0 = arith.cmpi eq, %arg0, %c0_i32 : i32
    %1 = arith.extui %0 : i1 to i32
    %c0_i32_0 = arith.constant 0 : i32
    %2 = arith.cmpi ne, %1, %c0_i32_0 : i32
    scf.if %2 {
      %cst_10 = arith.constant 0.000000e+00 : f32
      %12 = vector.broadcast %cst_10 : f32 to vector<16x512xf32>
      %c0_11 = arith.constant 0 : index
      %c0_12 = arith.constant 0 : index
      %13 = vector.load %arg9[%c0_11, %c0_12] : memref<16x512xf32, #tpu.memory_space<vmem>>, vector<16x512xf32>
      tpu.vector_store %arg9[%c0_11, %c0_12], %12 {strides = array<i32>} : memref<16x512xf32, #tpu.memory_space<vmem>>, vector<16x512xf32>,
    } else {
    }
    %c0 = arith.constant 0 : index
    %c0_1 = arith.constant 0 : index
    %3 = vector.load %arg9[%c0, %c0_1] : memref<16x512xf32, #tpu.memory_space<vmem>>, vector<16x512xf32>
    %c0_2 = arith.constant 0 : index
    %c0_3 = arith.constant 0 : index
    %4 = vector.load %arg1[%c0_2, %c0_3] : memref<16x768xbf16, #tpu.memory_space<vmem>>, vector<16x768xbf16>
    %c0_4 = arith.constant 0 : index
    %c0_5 = arith.constant 0 : index
    %5 = vector.load %arg2[%c0_4, %c0_5] : memref<768x512xbf16, #tpu.memory_space<vmem>>, vector<768x512xbf16>
    %cst = arith.constant dense<0.000000e+00> : vector<16x512xf32>
    %6 = tpu.matmul %4, %5, %cst {dimension_numbers = #tpu.dot_dimension_numbers<[1], [0], [0], [1], [0, 0, 1, 1], [], []>} : vector<16x768xbf16>, vector<768x512xbf16>, vector<16x512xf32> -> vector<16x512xf32>
    %7 = arith.addf %3, %6 : vector<16x512xf32>
    %c0_6 = arith.constant 0 : index
    %c0_7 = arith.constant 0 : index
    %8 = vector.load %arg9[%c0_6, %c0_7] : memref<16x512xf32, #tpu.memory_space<vmem>>, vector<16x512xf32>
    tpu.vector_store %arg9[%c0_6, %c0_7], %7 {strides = array<i32>} : memref<16x512xf32, #tpu.memory_space<vmem>>, vector<16x512xf32>,
    %c0_i32_8 = arith.constant 0 : i32
    %9 = arith.cmpi eq, %arg0, %c0_i32_8 : i32
    %10 = arith.extui %9 : i1 to i32
    %c0_i32_9 = arith.constant 0 : i32
    %11 = arith.cmpi ne, %10, %c0_i32_9 : i32
    scf.if %11 {
      %c0_10 = arith.constant 0 : index
      %c0_11 = arith.constant 0 : index
      %12 = vector.load %arg9[%c0_10, %c0_11] : memref<16x512xf32, #tpu.memory_space<vmem>>, vector<16x512xf32>
      %13 = arith.mulf %12, %12 : vector<16x512xf32>
      %cst_12 = arith.constant dense<0.000000e+00> : vector<16xf32>
      %14 = vector.multi_reduction <add>, %13, %cst_12 [1] : vector<16x512xf32> to vector<16xf32>
      %15 = vector.shape_cast %14 : vector<16xf32> to vector<16x1xf32>
      %cst_13 = arith.constant 9.99999996E-13 : f32
      %16 = vector.broadcast %cst_13 : f32 to vector<16x1xf32>
      %17 = arith.addf %15, %16 : vector<16x1xf32>
      %18 = math.rsqrt %17 : vector<16x1xf32>
      %19 = vector.broadcast %18 : vector<16x1xf32> to vector<16x512xf32>
      %20 = arith.mulf %12, %19 : vector<16x512xf32>
      %c0_14 = arith.constant 0 : index
      %c0_15 = arith.constant 0 : index
      %21 = vector.load %arg3[%c0_14, %c0_15] : memref<16x512xbf16, #tpu.memory_space<vmem>>, vector<16x512xbf16>
      %22 = arith.extf %21 : vector<16x512xbf16> to vector<16x512xf32>
      %23 = arith.mulf %20, %22 : vector<16x512xf32>
      %24 = arith.truncf %23 : vector<16x512xf32> to vector<16x512xbf16>
      %c0_16 = arith.constant 0 : index
      %c0_17 = arith.constant 0 : index
      %25 = vector.load %arg4[%c0_16, %c0_17] : memref<512x512xbf16, #tpu.memory_space<vmem>>, vector<512x512xbf16>
      %cst_18 = arith.constant dense<0.000000e+00> : vector<16x512xf32>
      %26 = tpu.matmul %24, %25, %cst_18 {dimension_numbers = #tpu.dot_dimension_numbers<[1], [0], [0], [1], [0, 0, 1, 1], [], []>} : vector<16x512xbf16>, vector<512x512xbf16>, vector<16x512xf32> -> vector<16x512xf32>
      %c0_19 = arith.constant 0 : index
      %c0_20 = arith.constant 0 : index
      %27 = vector.load %arg5[%c0_19, %c0_20] : memref<1x512xf32, #tpu.memory_space<vmem>>, vector<1x512xf32>
      %28 = vector.broadcast %27 : vector<1x512xf32> to vector<16x512xf32>
      %29 = arith.addf %26, %28 : vector<16x512xf32>
      %cst_21 = arith.constant 0.000000e+00 : f32
      %30 = vector.broadcast %cst_21 : f32 to vector<16x512xf32>
      %31 = arith.maximumf %29, %30 : vector<16x512xf32>
      %32 = arith.truncf %31 : vector<16x512xf32> to vector<16x512xbf16>
      %c0_22 = arith.constant 0 : index
      %c0_23 = arith.constant 0 : index
      %33 = vector.load %arg6[%c0_22, %c0_23] : memref<512x128xbf16, #tpu.memory_space<vmem>>, vector<512x128xbf16>
      %cst_24 = arith.constant dense<0.000000e+00> : vector<16x128xf32>
      %34 = tpu.matmul %32, %33, %cst_24 {dimension_numbers = #tpu.dot_dimension_numbers<[1], [0], [0], [1], [0, 0, 1, 1], [], []>} : vector<16x512xbf16>, vector<512x128xbf16>, vector<16x128xf32> -> vector<16x128xf32>
      %c0_25 = arith.constant 0 : index
      %c0_26 = arith.constant 0 : index
      %35 = vector.load %arg7[%c0_25, %c0_26] : memref<1x128xf32, #tpu.memory_space<vmem>>, vector<1x128xf32>
      %36 = vector.broadcast %35 : vector<1x128xf32> to vector<16x128xf32>
      %37 = arith.addf %34, %36 : vector<16x128xf32>
      %c0_27 = arith.constant 0 : index
      %c0_28 = arith.constant 0 : index
      %38 = vector.load %arg8[%c0_27, %c0_28] : memref<16x128xf32, #tpu.memory_space<vmem>>, vector<16x128xf32>
      tpu.vector_store %arg8[%c0_27, %c0_28], %37 {strides = array<i32>} : memref<16x128xf32, #tpu.memory_space<vmem>>, vector<16x128xf32>,
    } else {
    }
    return
  }
  func.func @transform_0(%arg0: i32) -> (i32, i32) {
    %c0_i32 = arith.constant 0 : i32
    %c0_i32_0 = arith.constant 0 : i32
    return %c0_i32, %arg0 : i32, i32
  }
  func.func @transform_1(%arg0: i32) -> (i32, i32) {
    %c0_i32 = arith.constant 0 : i32
    %c0_i32_0 = arith.constant 0 : i32
    return %arg0, %c0_i32 : i32, i32
  }
  func.func @transform_2(%arg0: i32) -> (i32, i32) {
    %c0_i32 = arith.constant 0 : i32
    %c0_i32_0 = arith.constant 0 : i32
    %c0_i32_1 = arith.constant 0 : i32
    return %c0_i32, %c0_i32_0 : i32, i32
  }
  func.func @transform_3(%arg0: i32) -> (i32, i32) {
    %c0_i32 = arith.constant 0 : i32
    %c0_i32_0 = arith.constant 0 : i32
    %c0_i32_1 = arith.constant 0 : i32
    return %c0_i32, %c0_i32_0 : i32, i32
  }
  func.func @transform_4(%arg0: i32) -> (i32, i32) {
    %c0_i32 = arith.constant 0 : i32
    %c0_i32_0 = arith.constant 0 : i32
    %c0_i32_1 = arith.constant 0 : i32
    return %c0_i32, %c0_i32_0 : i32, i32
  }
  func.func @transform_5(%arg0: i32) -> (i32, i32) {
    %c0_i32 = arith.constant 0 : i32
    %c0_i32_0 = arith.constant 0 : i32
    %c0_i32_1 = arith.constant 0 : i32
    return %c0_i32, %c0_i32_0 : i32, i32
  }
  func.func @transform_6(%arg0: i32) -> (i32, i32) {
    %c0_i32 = arith.constant 0 : i32
    %c0_i32_0 = arith.constant 0 : i32
    %c0_i32_1 = arith.constant 0 : i32
    return %c0_i32, %c0_i32_0 : i32, i32
  }
  func.func @transform_7(%arg0: i32) -> (i32, i32) {
    %c0_i32 = arith.constant 0 : i32
    %c0_i32_0 = arith.constant 0 : i32
    %c0_i32_1 = arith.constant 0 : i32
    return %c0_i32, %c0_i32_0 : i32, i32
  }
}

</mosaic_0001>

<llo_original>
// kernel: tpu_custom_call.1
$region0: #{tpu_custom_call.1}
  #allocation0 [shape = 'u32[]', space=smem, size = 0x4, offset = 0x4, fixed_abs, tag = 'smem constant byte address 0x4 - core index']
  #allocation1 [shape = 'u32[144,128]{1,0:T(1,128)}', space=vmem, size = 0x12000, scoped, tag = 'internal scratch']
  #allocation2 [shape = 'f32[16,512]{1,0:T(8,128)}', space=vmem, size = 0x8000, scoped, tag = 'scratch operand']
  %s0 = inlined_call_operand.hbm [shape: bf16[16,768], index: 0, kind: input, shape index: {}]
  %s1 = inlined_call_operand.hbm [shape: bf16[768,512], index: 1, kind: input, shape index: {}]
  %s2 = inlined_call_operand.hbm [shape: bf16[16,512], index: 2, kind: input, shape index: {}]
  %s3 = inlined_call_operand.hbm [shape: bf16[512,512], index: 3, kind: input, shape index: {}]
  %s4 = inlined_call_operand.vmem [shape: f32[1,512], index: 4, kind: input, shape index: {}]
  %s5 = inlined_call_operand.hbm [shape: bf16[512,128], index: 5, kind: input, shape index: {}]
  %s6 = inlined_call_operand.vmem [shape: f32[1,128], index: 6, kind: input, shape index: {}]
  %s7 = inlined_call_operand.hbm [shape: f32[16,128], index: 7, kind: output, shape index: {}]
  %s8 = sld [smem:[#allocation0]]
  $region66: #{tpu_custom_call.1} parent=0
    _
  %s10 = ssub.s32 1, %s8
  %s11 = scalar_select 0, %s10, %s8
  $region1: #{tpu_custom_call.1} parent=0
    #allocation3 [shape = 'u8[24576]{0}', space=vmem, size = 0x6000, scoped, tag = 'input window, operand 0, single buffered']
    #allocation4 [shape = 's32[1]{0}', space=sflag, size = 0x4, scoped, tag = 'scoped memory for tpu_custom_call.1']
    #allocation5 [shape = 's32[1]{0}', space=sflag, size = 0x4, scoped, tag = 'scoped memory for tpu_custom_call.1']
    #allocation6 [shape = 'u8[786432]{0}', space=vmem, size = 0xc0000, scoped, tag = 'input window, operand 1, single buffered']
    #allocation7 [shape = 's32[1]{0}', space=sflag, size = 0x4, scoped, tag = 'scoped memory for tpu_custom_call.1']
    #allocation8 [shape = 'u8[16384]{0}', space=vmem, size = 0x4000, scoped, tag = 'input window, operand 2, single buffered']
    #allocation9 [shape = 'u8[524288]{0}', space=vmem, size = 0x80000, scoped, tag = 'input window, operand 3, single buffered']
    #allocation10 [shape = 's32[1]{0}', space=sflag, size = 0x4, scoped, tag = 'scoped memory for tpu_custom_call.1']
    #allocation11 [shape = 'u8[131072]{0}', space=vmem, size = 0x20000, scoped, tag = 'input window, operand 5, single buffered']
    #allocation12 [shape = 'u8[8192]{0}', space=vmem, size = 0x2000, scoped, tag = 'output window, operand 0, single buffered']
    %12 = vsyncpa [#allocation4], 0
    %13 = vsyncpa [#allocation7], 0
    %14 = vsyncpa [#allocation10], 0
    %15 = vsyncpa [#allocation5], 0
    // Predicated region
    $region2: #{tpu_custom_call.1} parent=1 // pred_check
      _
    $region3: #{tpu_custom_call.1} parent=1 // pred_check_branch
      %17 = sbr.rel (0) target = $region5
    $region4: #{tpu_custom_call.1} parent=1 // pred_region
      %s19 = ssub.s32 768, 768
      %20 = vsyncadd [#allocation4], %s19
      %s21 = sshll.u32 [#allocation3], 4
      %s22 = int_to_ptr.vmem [resolvable:$true] %s21
      %27 = dma.hbm_to_vmem [thread:$0]  %s0, 768, %s22, [#allocation4], 384, 384, 24
    $region5: #{tpu_custom_call.1} parent=1 // pred_fallthru
      _
    // Predicated region
    $region6: #{tpu_custom_call.1} parent=1 // pred_check
      _
    $region7: #{tpu_custom_call.1} parent=1 // pred_check_branch
      %29 = sbr.rel (0) target = $region9
    $region8: #{tpu_custom_call.1} parent=1 // pred_region
      %s31 = ssub.s32 24576, 24576
      %32 = vsyncadd [#allocation7], %s31
      %s33 = sshll.u32 [#allocation6], 4
      %s34 = int_to_ptr.vmem [resolvable:$true] %s33
      %39 = dma.hbm_to_vmem [thread:$0]  %s1, 24576, %s34, [#allocation7], 256, 256, 16
    $region9: #{tpu_custom_call.1} parent=1 // pred_fallthru
      _
    // Predicated region
    $region10: #{tpu_custom_call.1} parent=1 // pred_check
      _
    $region11: #{tpu_custom_call.1} parent=1 // pred_check_branch
      %41 = sbr.rel (0) target = $region13
    $region12: #{tpu_custom_call.1} parent=1 // pred_region
      %s43 = ssub.s32 512, 512
      %44 = vsyncadd [#allocation7], %s43
      %s45 = sshll.u32 [#allocation8], 4
      %s46 = int_to_ptr.vmem [resolvable:$true] %s45
      %51 = dma.hbm_to_vmem [thread:$0]  %s2, 512, %s46, [#allocation7], 256, 256, 16
    $region13: #{tpu_custom_call.1} parent=1 // pred_fallthru
      _
    // Predicated region
    $region14: #{tpu_custom_call.1} parent=1 // pred_check
      _
    $region15: #{tpu_custom_call.1} parent=1 // pred_check_branch
      %53 = sbr.rel (0) target = $region17
    $region16: #{tpu_custom_call.1} parent=1 // pred_region
      %s55 = ssub.s32 16384, 16384
      %56 = vsyncadd [#allocation10], %s55
      %s57 = sshll.u32 [#allocation9], 4
      %s58 = int_to_ptr.vmem [resolvable:$true] %s57
      %63 = dma.hbm_to_vmem [thread:$0]  %s3, 16384, %s58, [#allocation10], 256, 256, 16
    $region17: #{tpu_custom_call.1} parent=1 // pred_fallthru
      _
    // Predicated region
    $region18: #{tpu_custom_call.1} parent=1 // pred_check
      _
    $region19: #{tpu_custom_call.1} parent=1 // pred_check_branch
      %65 = sbr.rel (0) target = $region21
    $region20: #{tpu_custom_call.1} parent=1 // pred_region
      _
    $region21: #{tpu_custom_call.1} parent=1 // pred_fallthru
      _
    // Predicated region
    $region22: #{tpu_custom_call.1} parent=1 // pred_check
      _
    $region23: #{tpu_custom_call.1} parent=1 // pred_check_branch
      %67 = sbr.rel (0) target = $region25
    $region24: #{tpu_custom_call.1} parent=1 // pred_region
      %s69 = ssub.s32 4096, 4096
      %70 = vsyncadd [#allocation10], %s69
      %s71 = sshll.u32 [#allocation11], 4
      %s72 = int_to_ptr.vmem [resolvable:$true] %s71
      %77 = dma.hbm_to_vmem [thread:$0]  %s5, 4096, %s72, [#allocation10], 64, 64, 4
    $region25: #{tpu_custom_call.1} parent=1 // pred_fallthru
      _
    // Predicated region
    $region26: #{tpu_custom_call.1} parent=1 // pred_check
      _
    $region27: #{tpu_custom_call.1} parent=1 // pred_check_branch
      %79 = sbr.rel (0) target = $region29
    $region28: #{tpu_custom_call.1} parent=1 // pred_region
      _
    $region29: #{tpu_custom_call.1} parent=1 // pred_fallthru
      _
    // Predicated region
    $region30: #{tpu_custom_call.1} parent=1 // pred_check
      _
    $region31: #{tpu_custom_call.1} parent=1 // pred_check_branch
      %81 = sbr.rel (0) target = $region33
    $region32: #{tpu_custom_call.1} parent=1 // pred_region
      %82 = dma.done [#allocation4], 768
    $region33: #{tpu_custom_call.1} parent=1 // pred_fallthru
      _
    // Predicated region
    $region34: #{tpu_custom_call.1} parent=1 // pred_check
      _
    $region35: #{tpu_custom_call.1} parent=1 // pred_check_branch
      %84 = sbr.rel (0) target = $region37
    $region36: #{tpu_custom_call.1} parent=1 // pred_region
      %85 = dma.done [#allocation7], 24576
    $region37: #{tpu_custom_call.1} parent=1 // pred_fallthru
      _
    // Predicated region
    $region38: #{tpu_custom_call.1} parent=1 // pred_check
      _
    $region39: #{tpu_custom_call.1} parent=1 // pred_check_branch
      %87 = sbr.rel (0) target = $region41
    $region40: #{tpu_custom_call.1} parent=1 // pred_region
      %88 = dma.done [#allocation7], 512
    $region41: #{tpu_custom_call.1} parent=1 // pred_fallthru
      _
    // Predicated region
    $region42: #{tpu_custom_call.1} parent=1 // pred_check
      _
    $region43: #{tpu_custom_call.1} parent=1 // pred_check_branch
      %90 = sbr.rel (0) target = $region45
    $region44: #{tpu_custom_call.1} parent=1 // pred_region
      %91 = dma.done [#allocation10], 16384
    $region45: #{tpu_custom_call.1} parent=1 // pred_fallthru
      _
    // Predicated region
    $region46: #{tpu_custom_call.1} parent=1 // pred_check
      _
    $region47: #{tpu_custom_call.1} parent=1 // pred_check_branch
      %93 = sbr.rel (0) target = $region49
    $region48: #{tpu_custom_call.1} parent=1 // pred_region
      %94 = dma.done [#allocation10], 4096
    $region49: #{tpu_custom_call.1} parent=1 // pred_fallthru
      _
    %p96 = scmp.eq.s32.totalorder 0, 0
    // Predicated region
    $region50: #{tpu_custom_call.1} parent=1 // pred_check
      %p97 = pneg %p96
    $region51: #{tpu_custom_call.1} parent=1 // pred_check_branch
      %99 = sbr.rel (%p97) target = $region53
    $region52: #{tpu_custom_call.1} parent=1 // pred_region
      %100 = vst [vmem:[#allocation2] sm:$0xff] 0.0
      %101 = vst [vmem:[#allocation2 + $0x8] sm:$0xff] 0.0
      %102 = vst [vmem:[#allocation2 + $0x10] sm:$0xff] 0.0
      %103 = vst [vmem:[#allocation2 + $0x18] sm:$0xff] 0.0
      %104 = vst [vmem:[#allocation2 + $0x20] sm:$0xff] 0.0
      %105 = vst [vmem:[#allocation2 + $0x28] sm:$0xff] 0.0
      %106 = vst [vmem:[#allocation2 + $0x30] sm:$0xff] 0.0
      %107 = vst [vmem:[#allocation2 + $0x38] sm:$0xff] 0.0
    $region53: #{tpu_custom_call.1} parent=1 // pred_fallthru
      _
    %v108 = vld [vmem:[#allocation2] sm:$0xff]
    %v109 = vld [vmem:[#allocation2 + $0x8] sm:$0xff]
    %v110 = vld [vmem:[#allocation2 + $0x10] sm:$0xff]
    %v111 = vld [vmem:[#allocation2 + $0x18] sm:$0xff]
    %v112 = vld [vmem:[#allocation2 + $0x20] sm:$0xff]
    %v113 = vld [vmem:[#allocation2 + $0x28] sm:$0xff]
    %v114 = vld [vmem:[#allocation2 + $0x30] sm:$0xff]
    %v115 = vld [vmem:[#allocation2 + $0x38] sm:$0xff]
    %v116 = vld [vmem:[#allocation3] sm:$0xff]
    %v117 = vld [vmem:[#allocation3 + $0x8] sm:$0xff]
    %v118 = vld [vmem:[#allocation3 + $0x10] sm:$0xff]
    %v119 = vld [vmem:[#allocation3 + $0x18] sm:$0xff]
    %v120 = vld [vmem:[#allocation3 + $0x20] sm:$0xff]
    %v121 = vld [vmem:[#allocation3 + $0x28] sm:$0xff]
    %v122 = vld [vmem:[#allocation6] sm:$0xff]
    %v123 = vld [vmem:[#allocation6 + $0x8] sm:$0xff]
    %v124 = vld [vmem:[#allocation6 + $0x10] sm:$0xff]
    %v125 = vld [vmem:[#allocation6 + $0x18] sm:$0xff]
    %v126 = vld [vmem:[#allocation6 + $0x20] sm:$0xff]
    %v127 = vld [vmem:[#allocation6 + $0x28] sm:$0xff]
    %v128 = vld [vmem:[#allocation6 + $0x30] sm:$0xff]
    %v129 = vld [vmem:[#allocation6 + $0x38] sm:$0xff]
    %v130 = vld [vmem:[#allocation6 + $0x40] sm:$0xff]
    %v131 = vld [vmem:[#allocation6 + $0x48] sm:$0xff]
    %v132 = vld [vmem:[#allocation6 + $0x50] sm:$0xff]
    %v133 = vld [vmem:[#allocation6 + $0x58] sm:$0xff]
    %v134 = vld [vmem:[#allocation6 + $0x60] sm:$0xff]
    %v135 = vld [vmem:[#allocation6 + $0x68] sm:$0xff]
    %v136 = vld [vmem:[#allocation6 + $0x70] sm:$0xff]
    %v137 = vld [vmem:[#allocation6 + $0x78] sm:$0xff]
    %v138 = vld [vmem:[#allocation6 + $0x80] sm:$0xff]
    %v139 = vld [vmem:[#allocation6 + $0x88] sm:$0xff]
    %v140 = vld [vmem:[#allocation6 + $0x90] sm:$0xff]
    %v141 = vld [vmem:[#allocation6 + $0x98] sm:$0xff]
    %v142 = vld [vmem:[#allocation6 + $0xa0] sm:$0xff]
    %v143 = vld [vmem:[#allocation6 + $0xa8] sm:$0xff]
    %v144 = vld [vmem:[#allocation6 + $0xb0] sm:$0xff]
    %v145 = vld [vmem:[#allocation6 + $0xb8] sm:$0xff]
    %v146 = vld [vmem:[#allocation6 + $0xc0] sm:$0xff]
    %v147 = vld [vmem:[#allocation6 + $0xc8] sm:$0xff]
    %v148 = vld [vmem:[#allocation6 + $0xd0] sm:$0xff]
    %v149 = vld [vmem:[#allocation6 + $0xd8] sm:$0xff]
    %v150 = vld [vmem:[#allocation6 + $0xe0] sm:$0xff]
    %v151 = vld [vmem:[#allocation6 + $0xe8] sm:$0xff]
    %v152 = vld [vmem:[#allocation6 + $0xf0] sm:$0xff]
    %v153 = vld [vmem:[#allocation6 + $0xf8] sm:$0xff]
    %v154 = vld [vmem:[#allocation6 + $0x100] sm:$0xff]
    %v155 = vld [vmem:[#allocation6 + $0x108] sm:$0xff]
    %v156 = vld [vmem:[#allocation6 + $0x110] sm:$0xff]
    %v157 = vld [vmem:[#allocation6 + $0x118] sm:$0xff]
    %v158 = vld [vmem:[#allocation6 + $0x120] sm:$0xff]
    %v159 = vld [vmem:[#allocation6 + $0x128] sm:$0xff]
    %v160 = vld [vmem:[#allocation6 + $0x130] sm:$0xff]
    %v161 = vld [vmem:[#allocation6 + $0x138] sm:$0xff]
    %v162 = vld [vmem:[#allocation6 + $0x140] sm:$0xff]
    %v163 = vld [vmem:[#allocation6 + $0x148] sm:$0xff]
    %v164 = vld [vmem:[#allocation6 + $0x150] sm:$0xff]
    %v165 = vld [vmem:[#allocation6 + $0x158] sm:$0xff]
    %v166 = vld [vmem:[#allocation6 + $0x160] sm:$0xff]
    %v167 = vld [vmem:[#allocation6 + $0x168] sm:$0xff]
    %v168 = vld [vmem:[#allocation6 + $0x170] sm:$0xff]
    %v169 = vld [vmem:[#allocation6 + $0x178] sm:$0xff]
    %v170 = vld [vmem:[#allocation6 + $0x180] sm:$0xff]
    %v171 = vld [vmem:[#allocation6 + $0x188] sm:$0xff]
    %v172 = vld [vmem:[#allocation6 + $0x190] sm:$0xff]
    %v173 = vld [vmem:[#allocation6 + $0x198] sm:$0xff]
    %v174 = vld [vmem:[#allocation6 + $0x1a0] sm:$0xff]
    %v175 = vld [vmem:[#allocation6 + $0x1a8] sm:$0xff]
    %v176 = vld [vmem:[#allocation6 + $0x1b0] sm:$0xff]
    %v177 = vld [vmem:[#allocation6 + $0x1b8] sm:$0xff]
    %v178 = vld [vmem:[#allocation6 + $0x1c0] sm:$0xff]
    %v179 = vld [vmem:[#allocation6 + $0x1c8] sm:$0xff]
    %v180 = vld [vmem:[#allocation6 + $0x1d0] sm:$0xff]
    %v181 = vld [vmem:[#allocation6 + $0x1d8] sm:$0xff]
    %v182 = vld [vmem:[#allocation6 + $0x1e0] sm:$0xff]
    %v183 = vld [vmem:[#allocation6 + $0x1e8] sm:$0xff]
    %v184 = vld [vmem:[#allocation6 + $0x1f0] sm:$0xff]
    %v185 = vld [vmem:[#allocation6 + $0x1f8] sm:$0xff]
    %v186 = vld [vmem:[#allocation6 + $0x200] sm:$0xff]
    %v187 = vld [vmem:[#allocation6 + $0x208] sm:$0xff]
    %v188 = vld [vmem:[#allocation6 + $0x210] sm:$0xff]
    %v189 = vld [vmem:[#allocation6 + $0x218] sm:$0xff]
    %v190 = vld [vmem:[#allocation6 + $0x220] sm:$0xff]
    %v191 = vld [vmem:[#allocation6 + $0x228] sm:$0xff]
    %v192 = vld [vmem:[#allocation6 + $0x230] sm:$0xff]
    %v193 = vld [vmem:[#allocation6 + $0x238] sm:$0xff]
    %v194 = vld [vmem:[#allocation6 + $0x240] sm:$0xff]
    %v195 = vld [vmem:[#allocation6 + $0x248] sm:$0xff]
    %v196 = vld [vmem:[#allocation6 + $0x250] sm:$0xff]
    %v197 = vld [vmem:[#allocation6 + $0x258] sm:$0xff]
    %v198 = vld [vmem:[#allocation6 + $0x260] sm:$0xff]
    %v199 = vld [vmem:[#allocation6 + $0x268] sm:$0xff]
    %v200 = vld [vmem:[#allocation6 + $0x270] sm:$0xff]
    %v201 = vld [vmem:[#allocation6 + $0x278] sm:$0xff]
    %v202 = vld [vmem:[#allocation6 + $0x280] sm:$0xff]
    %v203 = vld [vmem:[#allocation6 + $0x288] sm:$0xff]
    %v204 = vld [vmem:[#allocation6 + $0x290] sm:$0xff]
    %v205 = vld [vmem:[#allocation6 + $0x298] sm:$0xff]
    %v206 = vld [vmem:[#allocation6 + $0x2a0] sm:$0xff]
    %v207 = vld [vmem:[#allocation6 + $0x2a8] sm:$0xff]
    %v208 = vld [vmem:[#allocation6 + $0x2b0] sm:$0xff]
    %v209 = vld [vmem:[#allocation6 + $0x2b8] sm:$0xff]
    %v210 = vld [vmem:[#allocation6 + $0x2c0] sm:$0xff]
    %v211 = vld [vmem:[#allocation6 + $0x2c8] sm:$0xff]
    %v212 = vld [vmem:[#allocation6 + $0x2d0] sm:$0xff]
    %v213 = vld [vmem:[#allocation6 + $0x2d8] sm:$0xff]
    %v214 = vld [vmem:[#allocation6 + $0x2e0] sm:$0xff]
    %v215 = vld [vmem:[#allocation6 + $0x2e8] sm:$0xff]
    %v216 = vld [vmem:[#allocation6 + $0x2f0] sm:$0xff]
    %v217 = vld [vmem:[#allocation6 + $0x2f8] sm:$0xff]
    %v218 = vld [vmem:[#allocation6 + $0x300] sm:$0xff]
    %v219 = vld [vmem:[#allocation6 + $0x308] sm:$0xff]
    %v220 = vld [vmem:[#allocation6 + $0x310] sm:$0xff]
    %v221 = vld [vmem:[#allocation6 + $0x318] sm:$0xff]
    %v222 = vld [vmem:[#allocation6 + $0x320] sm:$0xff]
    %v223 = vld [vmem:[#allocation6 + $0x328] sm:$0xff]
    %v224 = vld [vmem:[#allocation6 + $0x330] sm:$0xff]
    %v225 = vld [vmem:[#allocation6 + $0x338] sm:$0xff]
    %v226 = vld [vmem:[#allocation6 + $0x340] sm:$0xff]
    %v227 = vld [vmem:[#allocation6 + $0x348] sm:$0xff]
    %v228 = vld [vmem:[#allocation6 + $0x350] sm:$0xff]
    %v229 = vld [vmem:[#allocation6 + $0x358] sm:$0xff]
    %v230 = vld [vmem:[#allocation6 + $0x360] sm:$0xff]
    %v231 = vld [vmem:[#allocation6 + $0x368] sm:$0xff]
    %v232 = vld [vmem:[#allocation6 + $0x370] sm:$0xff]
    %v233 = vld [vmem:[#allocation6 + $0x378] sm:$0xff]
    %v234 = vld [vmem:[#allocation6 + $0x380] sm:$0xff]
    %v235 = vld [vmem:[#allocation6 + $0x388] sm:$0xff]
    %v236 = vld [vmem:[#allocation6 + $0x390] sm:$0xff]
    %v237 = vld [vmem:[#allocation6 + $0x398] sm:$0xff]
    %v238 = vld [vmem:[#allocation6 + $0x3a0] sm:$0xff]
    %v239 = vld [vmem:[#allocation6 + $0x3a8] sm:$0xff]
    %v240 = vld [vmem:[#allocation6 + $0x3b0] sm:$0xff]
    %v241 = vld [vmem:[#allocation6 + $0x3b8] sm:$0xff]
    %v242 = vld [vmem:[#allocation6 + $0x3c0] sm:$0xff]
    %v243 = vld [vmem:[#allocation6 + $0x3c8] sm:$0xff]
    %v244 = vld [vmem:[#allocation6 + $0x3d0] sm:$0xff]
    %v245 = vld [vmem:[#allocation6 + $0x3d8] sm:$0xff]
    %v246 = vld [vmem:[#allocation6 + $0x3e0] sm:$0xff]
    %v247 = vld [vmem:[#allocation6 + $0x3e8] sm:$0xff]
    %v248 = vld [vmem:[#allocation6 + $0x3f0] sm:$0xff]
    %v249 = vld [vmem:[#allocation6 + $0x3f8] sm:$0xff]
    %v250 = vld [vmem:[#allocation6 + $0x400] sm:$0xff]
    %v251 = vld [vmem:[#allocation6 + $0x408] sm:$0xff]
    %v252 = vld [vmem:[#allocation6 + $0x410] sm:$0xff]
    %v253 = vld [vmem:[#allocation6 + $0x418] sm:$0xff]
    %v254 = vld [vmem:[#allocation6 + $0x420] sm:$0xff]
    %v255 = vld [vmem:[#allocation6 + $0x428] sm:$0xff]
    %v256 = vld [vmem:[#allocation6 + $0x430] sm:$0xff]
    %v257 = vld [vmem:[#allocation6 + $0x438] sm:$0xff]
    %v258 = vld [vmem:[#allocation6 + $0x440] sm:$0xff]
    %v259 = vld [vmem:[#allocation6 + $0x448] sm:$0xff]
    %v260 = vld [vmem:[#allocation6 + $0x450] sm:$0xff]
    %v261 = vld [vmem:[#allocation6 + $0x458] sm:$0xff]
    %v262 = vld [vmem:[#allocation6 + $0x460] sm:$0xff]
    %v263 = vld [vmem:[#allocation6 + $0x468] sm:$0xff]
    %v264 = vld [vmem:[#allocation6 + $0x470] sm:$0xff]
    %v265 = vld [vmem:[#allocation6 + $0x478] sm:$0xff]
    %v266 = vld [vmem:[#allocation6 + $0x480] sm:$0xff]
    %v267 = vld [vmem:[#allocation6 + $0x488] sm:$0xff]
    %v268 = vld [vmem:[#allocation6 + $0x490] sm:$0xff]
    %v269 = vld [vmem:[#allocation6 + $0x498] sm:$0xff]
    %v270 = vld [vmem:[#allocation6 + $0x4a0] sm:$0xff]
    %v271 = vld [vmem:[#allocation6 + $0x4a8] sm:$0xff]
    %v272 = vld [vmem:[#allocation6 + $0x4b0] sm:$0xff]
    %v273 = vld [vmem:[#allocation6 + $0x4b8] sm:$0xff]
    %v274 = vld [vmem:[#allocation6 + $0x4c0] sm:$0xff]
    %v275 = vld [vmem:[#allocation6 + $0x4c8] sm:$0xff]
    %v276 = vld [vmem:[#allocation6 + $0x4d0] sm:$0xff]
    %v277 = vld [vmem:[#allocation6 + $0x4d8] sm:$0xff]
    %v278 = vld [vmem:[#allocation6 + $0x4e0] sm:$0xff]
    %v279 = vld [vmem:[#allocation6 + $0x4e8] sm:$0xff]
    %v280 = vld [vmem:[#allocation6 + $0x4f0] sm:$0xff]
    %v281 = vld [vmem:[#allocation6 + $0x4f8] sm:$0xff]
    %v282 = vld [vmem:[#allocation6 + $0x500] sm:$0xff]
    %v283 = vld [vmem:[#allocation6 + $0x508] sm:$0xff]
    %v284 = vld [vmem:[#allocation6 + $0x510] sm:$0xff]
    %v285 = vld [vmem:[#allocation6 + $0x518] sm:$0xff]
    %v286 = vld [vmem:[#allocation6 + $0x520] sm:$0xff]
    %v287 = vld [vmem:[#allocation6 + $0x528] sm:$0xff]
    %v288 = vld [vmem:[#allocation6 + $0x530] sm:$0xff]
    %v289 = vld [vmem:[#allocation6 + $0x538] sm:$0xff]
    %v290 = vld [vmem:[#allocation6 + $0x540] sm:$0xff]
    %v291 = vld [vmem:[#allocation6 + $0x548] sm:$0xff]
    %v292 = vld [vmem:[#allocation6 + $0x550] sm:$0xff]
    %v293 = vld [vmem:[#allocation6 + $0x558] sm:$0xff]
    %v294 = vld [vmem:[#allocation6 + $0x560] sm:$0xff]
    %v295 = vld [vmem:[#allocation6 + $0x568] sm:$0xff]
    %v296 = vld [vmem:[#allocation6 + $0x570] sm:$0xff]
    %v297 = vld [vmem:[#allocation6 + $0x578] sm:$0xff]
    %v298 = vld [vmem:[#allocation6 + $0x580] sm:$0xff]
    %v299 = vld [vmem:[#allocation6 + $0x588] sm:$0xff]
    %v300 = vld [vmem:[#allocation6 + $0x590] sm:$0xff]
    %v301 = vld [vmem:[#allocation6 + $0x598] sm:$0xff]
    %v302 = vld [vmem:[#allocation6 + $0x5a0] sm:$0xff]
    %v303 = vld [vmem:[#allocation6 + $0x5a8] sm:$0xff]
    %v304 = vld [vmem:[#allocation6 + $0x5b0] sm:$0xff]
    %v305 = vld [vmem:[#allocation6 + $0x5b8] sm:$0xff]
    %v306 = vld [vmem:[#allocation6 + $0x5c0] sm:$0xff]
    %v307 = vld [vmem:[#allocation6 + $0x5c8] sm:$0xff]
    %v308 = vld [vmem:[#allocation6 + $0x5d0] sm:$0xff]
    %v309 = vld [vmem:[#allocation6 + $0x5d8] sm:$0xff]
    %v310 = vld [vmem:[#allocation6 + $0x5e0] sm:$0xff]
    %v311 = vld [vmem:[#allocation6 + $0x5e8] sm:$0xff]
    %v312 = vld [vmem:[#allocation6 + $0x5f0] sm:$0xff]
    %v313 = vld [vmem:[#allocation6 + $0x5f8] sm:$0xff]
    %v320 = vunpack.c.l.b16 %v116
    %v321 = vunpack.c.h.b16 %v116
    %v322 = vunpack.c.l.b16 %v117
    %v323 = vunpack.c.h.b16 %v117
    %v324 = vunpack.c.l.b16 %v118
    %v325 = vunpack.c.h.b16 %v118
    %v326 = vunpack.c.l.b16 %v119
    %v327 = vunpack.c.h.b16 %v119
    %v328 = vunpack.c.l.b16 %v120
    %v329 = vunpack.c.h.b16 %v120
    %v330 = vunpack.c.l.b16 %v121
    %v331 = vunpack.c.h.b16 %v121
    %v332 = vpack.c.b16 %v326, %v320
    %v333 = vpack.c.b16 %v327, %v321
    %v334 = vpack.c.b16 %v328, %v322
    %v335 = vpack.c.b16 %v329, %v323
    %v336 = vpack.c.b16 %v330, %v324
    %v337 = vpack.c.b16 %v331, %v325
    %v536 = vunpack.c.l.b16 %v122
    %v537 = vunpack.c.h.b16 %v122
    %v538 = vunpack.c.l.b16 %v123
    %v539 = vunpack.c.h.b16 %v123
    %v540 = vunpack.c.l.b16 %v124
    %v541 = vunpack.c.h.b16 %v124
    %v542 = vunpack.c.l.b16 %v125
    %v543 = vunpack.c.h.b16 %v125
    %v544 = vunpack.c.l.b16 %v126
    %v545 = vunpack.c.h.b16 %v126
    %v546 = vunpack.c.l.b16 %v127
    %v547 = vunpack.c.h.b16 %v127
    %v548 = vunpack.c.l.b16 %v128
    %v549 = vunpack.c.h.b16 %v128
    %v550 = vunpack.c.l.b16 %v129
    %v551 = vunpack.c.h.b16 %v129
    %v552 = vunpack.c.l.b16 %v130
    %v553 = vunpack.c.h.b16 %v130
    %v554 = vunpack.c.l.b16 %v131
    %v555 = vunpack.c.h.b16 %v131
    %v556 = vunpack.c.l.b16 %v132
    %v557 = vunpack.c.h.b16 %v132
    %v558 = vunpack.c.l.b16 %v133
    %v559 = vunpack.c.h.b16 %v133
    %v560 = vunpack.c.l.b16 %v134
    %v561 = vunpack.c.h.b16 %v134
    %v562 = vunpack.c.l.b16 %v135
    %v563 = vunpack.c.h.b16 %v135
    %v564 = vunpack.c.l.b16 %v136
    %v565 = vunpack.c.h.b16 %v136
    %v566 = vunpack.c.l.b16 %v137
    %v567 = vunpack.c.h.b16 %v137
    %v568 = vunpack.c.l.b16 %v138
    %v569 = vunpack.c.h.b16 %v138
    %v570 = vunpack.c.l.b16 %v139
    %v571 = vunpack.c.h.b16 %v139
    %v572 = vunpack.c.l.b16 %v140
    %v573 = vunpack.c.h.b16 %v140
    %v574 = vunpack.c.l.b16 %v141
    %v575 = vunpack.c.h.b16 %v141
    %v576 = vunpack.c.l.b16 %v142
    %v577 = vunpack.c.h.b16 %v142
    %v578 = vunpack.c.l.b16 %v143
    %v579 = vunpack.c.h.b16 %v143
    %v580 = vunpack.c.l.b16 %v144
    %v581 = vunpack.c.h.b16 %v144
    %v582 = vunpack.c.l.b16 %v145
    %v583 = vunpack.c.h.b16 %v145
    %v584 = vunpack.c.l.b16 %v146
    %v585 = vunpack.c.h.b16 %v146
    %v586 = vunpack.c.l.b16 %v147
    %v587 = vunpack.c.h.b16 %v147
    %v588 = vunpack.c.l.b16 %v148
    %v589 = vunpack.c.h.b16 %v148
    %v590 = vunpack.c.l.b16 %v149
    %v591 = vunpack.c.h.b16 %v149
    %v592 = vunpack.c.l.b16 %v150
    %v593 = vunpack.c.h.b16 %v150
    %v594 = vunpack.c.l.b16 %v151
    %v595 = vunpack.c.h.b16 %v151
    %v596 = vunpack.c.l.b16 %v152
    %v597 = vunpack.c.h.b16 %v152
    %v598 = vunpack.c.l.b16 %v153
    %v599 = vunpack.c.h.b16 %v153
    %v600 = vunpack.c.l.b16 %v154
    %v601 = vunpack.c.h.b16 %v154
    %v602 = vunpack.c.l.b16 %v155
    %v603 = vunpack.c.h.b16 %v155
    %v604 = vunpack.c.l.b16 %v156
    %v605 = vunpack.c.h.b16 %v156
    %v606 = vunpack.c.l.b16 %v157
    %v607 = vunpack.c.h.b16 %v157
    %v608 = vunpack.c.l.b16 %v158
    %v609 = vunpack.c.h.b16 %v158
    %v610 = vunpack.c.l.b16 %v159
    %v611 = vunpack.c.h.b16 %v159
    %v612 = vunpack.c.l.b16 %v160
    %v613 = vunpack.c.h.b16 %v160
    %v614 = vunpack.c.l.b16 %v161
    %v615 = vunpack.c.h.b16 %v161
    %v616 = vunpack.c.l.b16 %v162
    %v617 = vunpack.c.h.b16 %v162
    %v618 = vunpack.c.l.b16 %v163
    %v619 = vunpack.c.h.b16 %v163
    %v620 = vunpack.c.l.b16 %v164
    %v621 = vunpack.c.h.b16 %v164
    %v622 = vunpack.c.l.b16 %v165
    %v623 = vunpack.c.h.b16 %v165
    %v624 = vunpack.c.l.b16 %v166
    %v625 = vunpack.c.h.b16 %v166
    %v626 = vunpack.c.l.b16 %v167
    %v627 = vunpack.c.h.b16 %v167
    %v628 = vunpack.c.l.b16 %v168
    %v629 = vunpack.c.h.b16 %v168
    %v630 = vunpack.c.l.b16 %v169
    %v631 = vunpack.c.h.b16 %v169
    %v632 = vunpack.c.l.b16 %v170
    %v633 = vunpack.c.h.b16 %v170
    %v634 = vunpack.c.l.b16 %v171
    %v635 = vunpack.c.h.b16 %v171
    %v636 = vunpack.c.l.b16 %v172
    %v637 = vunpack.c.h.b16 %v172
    %v638 = vunpack.c.l.b16 %v173
    %v639 = vunpack.c.h.b16 %v173
    %v640 = vunpack.c.l.b16 %v174
    %v641 = vunpack.c.h.b16 %v174
    %v642 = vunpack.c.l.b16 %v175
    %v643 = vunpack.c.h.b16 %v175
    %v644 = vunpack.c.l.b16 %v176
    %v645 = vunpack.c.h.b16 %v176
    %v646 = vunpack.c.l.b16 %v177
    %v647 = vunpack.c.h.b16 %v177
    %v648 = vunpack.c.l.b16 %v178
    %v649 = vunpack.c.h.b16 %v178
    %v650 = vunpack.c.l.b16 %v179
    %v651 = vunpack.c.h.b16 %v179
    %v652 = vunpack.c.l.b16 %v180
    %v653 = vunpack.c.h.b16 %v180
    %v654 = vunpack.c.l.b16 %v181
    %v655 = vunpack.c.h.b16 %v181
    %v656 = vunpack.c.l.b16 %v182
    %v657 = vunpack.c.h.b16 %v182
    %v658 = vunpack.c.l.b16 %v183
    %v659 = vunpack.c.h.b16 %v183
    %v660 = vunpack.c.l.b16 %v184
    %v661 = vunpack.c.h.b16 %v184
    %v662 = vunpack.c.l.b16 %v185
    %v663 = vunpack.c.h.b16 %v185
    %v664 = vunpack.c.l.b16 %v186
    %v665 = vunpack.c.h.b16 %v186
    %v666 = vunpack.c.l.b16 %v187
    %v667 = vunpack.c.h.b16 %v187
    %v668 = vunpack.c.l.b16 %v188
    %v669 = vunpack.c.h.b16 %v188
    %v670 = vunpack.c.l.b16 %v189
    %v671 = vunpack.c.h.b16 %v189
    %v672 = vunpack.c.l.b16 %v190
    %v673 = vunpack.c.h.b16 %v190
    %v674 = vunpack.c.l.b16 %v191
    %v675 = vunpack.c.h.b16 %v191
    %v676 = vunpack.c.l.b16 %v192
    %v677 = vunpack.c.h.b16 %v192
    %v678 = vunpack.c.l.b16 %v193
    %v679 = vunpack.c.h.b16 %v193
    %v680 = vunpack.c.l.b16 %v194
    %v681 = vunpack.c.h.b16 %v194
    %v682 = vunpack.c.l.b16 %v195
    %v683 = vunpack.c.h.b16 %v195
    %v684 = vunpack.c.l.b16 %v196
    %v685 = vunpack.c.h.b16 %v196
    %v686 = vunpack.c.l.b16 %v197
    %v687 = vunpack.c.h.b16 %v197
    %v688 = vunpack.c.l.b16 %v198
    %v689 = vunpack.c.h.b16 %v198
    %v690 = vunpack.c.l.b16 %v199
    %v691 = vunpack.c.h.b16 %v199
    %v692 = vunpack.c.l.b16 %v200
    %v693 = vunpack.c.h.b16 %v200
    %v694 = vunpack.c.l.b16 %v201
    %v695 = vunpack.c.h.b16 %v201
    %v696 = vunpack.c.l.b16 %v202
    %v697 = vunpack.c.h.b16 %v202
    %v698 = vunpack.c.l.b16 %v203
    %v699 = vunpack.c.h.b16 %v203
    %v700 = vunpack.c.l.b16 %v204
    %v701 = vunpack.c.h.b16 %v204
    %v702 = vunpack.c.l.b16 %v205
    %v703 = vunpack.c.h.b16 %v205
    %v704 = vunpack.c.l.b16 %v206
    %v705 = vunpack.c.h.b16 %v206
    %v706 = vunpack.c.l.b16 %v207
    %v707 = vunpack.c.h.b16 %v207
    %v708 = vunpack.c.l.b16 %v208
    %v709 = vunpack.c.h.b16 %v208
    %v710 = vunpack.c.l.b16 %v209
    %v711 = vunpack.c.h.b16 %v209
    %v712 = vunpack.c.l.b16 %v210
    %v713 = vunpack.c.h.b16 %v210
    %v714 = vunpack.c.l.b16 %v211
    %v715 = vunpack.c.h.b16 %v211
    %v716 = vunpack.c.l.b16 %v212
    %v717 = vunpack.c.h.b16 %v212
    %v718 = vunpack.c.l.b16 %v213
    %v719 = vunpack.c.h.b16 %v213
    %v720 = vunpack.c.l.b16 %v214
    %v721 = vunpack.c.h.b16 %v214
    %v722 = vunpack.c.l.b16 %v215
    %v723 = vunpack.c.h.b16 %v215
    %v724 = vunpack.c.l.b16 %v216
    %v725 = vunpack.c.h.b16 %v216
    %v726 = vunpack.c.l.b16 %v217
    %v727 = vunpack.c.h.b16 %v217
    %v728 = vunpack.c.l.b16 %v218
    %v729 = vunpack.c.h.b16 %v218
    %v730 = vunpack.c.l.b16 %v219
    %v731 = vunpack.c.h.b16 %v219
    %v732 = vunpack.c.l.b16 %v220
    %v733 = vunpack.c.h.b16 %v220
    %v734 = vunpack.c.l.b16 %v221
    %v735 = vunpack.c.h.b16 %v221
    %v736 = vunpack.c.l.b16 %v222
    %v737 = vunpack.c.h.b16 %v222
    %v738 = vunpack.c.l.b16 %v223
    %v739 = vunpack.c.h.b16 %v223
    %v740 = vunpack.c.l.b16 %v224
    %v741 = vunpack.c.h.b16 %v224
    %v742 = vunpack.c.l.b16 %v225
    %v743 = vunpack.c.h.b16 %v225
    %v744 = vunpack.c.l.b16 %v226
    %v745 = vunpack.c.h.b16 %v226
    %v746 = vunpack.c.l.b16 %v227
    %v747 = vunpack.c.h.b16 %v227
    %v748 = vunpack.c.l.b16 %v228
    %v749 = vunpack.c.h.b16 %v228
    %v750 = vunpack.c.l.b16 %v229
    %v751 = vunpack.c.h.b16 %v229
    %v752 = vunpack.c.l.b16 %v230
    %v753 = vunpack.c.h.b16 %v230
    %v754 = vunpack.c.l.b16 %v231
    %v755 = vunpack.c.h.b16 %v231
    %v756 = vunpack.c.l.b16 %v232
    %v757 = vunpack.c.h.b16 %v232
    %v758 = vunpack.c.l.b16 %v233
    %v759 = vunpack.c.h.b16 %v233
    %v760 = vunpack.c.l.b16 %v234
    %v761 = vunpack.c.h.b16 %v234
    %v762 = vunpack.c.l.b16 %v235
    %v763 = vunpack.c.h.b16 %v235
    %v764 = vunpack.c.l.b16 %v236
    %v765 = vunpack.c.h.b16 %v236
    %v766 = vunpack.c.l.b16 %v237
    %v767 = vunpack.c.h.b16 %v237
    %v768 = vunpack.c.l.b16 %v238
    %v769 = vunpack.c.h.b16 %v238
    %v770 = vunpack.c.l.b16 %v239
    %v771 = vunpack.c.h.b16 %v239
    %v772 = vunpack.c.l.b16 %v240
    %v773 = vunpack.c.h.b16 %v240
    %v774 = vunpack.c.l.b16 %v241
    %v775 = vunpack.c.h.b16 %v241
    %v776 = vunpack.c.l.b16 %v242
    %v777 = vunpack.c.h.b16 %v242
    %v778 = vunpack.c.l.b16 %v243
    %v779 = vunpack.c.h.b16 %v243
    %v780 = vunpack.c.l.b16 %v244
    %v781 = vunpack.c.h.b16 %v244
    %v782 = vunpack.c.l.b16 %v245
    %v783 = vunpack.c.h.b16 %v245
    %v784 = vunpack.c.l.b16 %v246
    %v785 = vunpack.c.h.b16 %v246
    %v786 = vunpack.c.l.b16 %v247
    %v787 = vunpack.c.h.b16 %v247
    %v788 = vunpack.c.l.b16 %v248
    %v789 = vunpack.c.h.b16 %v248
    %v790 = vunpack.c.l.b16 %v249
    %v791 = vunpack.c.h.b16 %v249
    %v792 = vunpack.c.l.b16 %v250
    %v793 = vunpack.c.h.b16 %v250
    %v794 = vunpack.c.l.b16 %v251
    %v795 = vunpack.c.h.b16 %v251
    %v796 = vunpack.c.l.b16 %v252
    %v797 = vunpack.c.h.b16 %v252
    %v798 = vunpack.c.l.b16 %v253
    %v799 = vunpack.c.h.b16 %v253
    %v800 = vunpack.c.l.b16 %v254
    %v801 = vunpack.c.h.b16 %v254
    %v802 = vunpack.c.l.b16 %v255
    %v803 = vunpack.c.h.b16 %v255
    %v804 = vunpack.c.l.b16 %v256
    %v805 = vunpack.c.h.b16 %v256
    %v806 = vunpack.c.l.b16 %v257
    %v807 = vunpack.c.h.b16 %v257
    %v808 = vunpack.c.l.b16 %v258
    %v809 = vunpack.c.h.b16 %v258
    %v810 = vunpack.c.l.b16 %v259
    %v811 = vunpack.c.h.b16 %v259
    %v812 = vunpack.c.l.b16 %v260
    %v813 = vunpack.c.h.b16 %v260
    %v814 = vunpack.c.l.b16 %v261
    %v815 = vunpack.c.h.b16 %v261
    %v816 = vunpack.c.l.b16 %v262
    %v817 = vunpack.c.h.b16 %v262
    %v818 = vunpack.c.l.b16 %v263
    %v819 = vunpack.c.h.b16 %v263
    %v820 = vunpack.c.l.b16 %v264
    %v821 = vunpack.c.h.b16 %v264
    %v822 = vunpack.c.l.b16 %v265
    %v823 = vunpack.c.h.b16 %v265
    %v824 = vunpack.c.l.b16 %v266
    %v825 = vunpack.c.h.b16 %v266
    %v826 = vunpack.c.l.b16 %v267
    %v827 = vunpack.c.h.b16 %v267
    %v828 = vunpack.c.l.b16 %v268
    %v829 = vunpack.c.h.b16 %v268
    %v830 = vunpack.c.l.b16 %v269
    %v831 = vunpack.c.h.b16 %v269
    %v832 = vunpack.c.l.b16 %v270
    %v833 = vunpack.c.h.b16 %v270
    %v834 = vunpack.c.l.b16 %v271
    %v835 = vunpack.c.h.b16 %v271
    %v836 = vunpack.c.l.b16 %v272
    %v837 = vunpack.c.h.b16 %v272
    %v838 = vunpack.c.l.b16 %v273
    %v839 = vunpack.c.h.b16 %v273
    %v840 = vunpack.c.l.b16 %v274
    %v841 = vunpack.c.h.b16 %v274
    %v842 = vunpack.c.l.b16 %v275
    %v843 = vunpack.c.h.b16 %v275
    %v844 = vunpack.c.l.b16 %v276
    %v845 = vunpack.c.h.b16 %v276
    %v846 = vunpack.c.l.b16 %v277
    %v847 = vunpack.c.h.b16 %v277
    %v848 = vunpack.c.l.b16 %v278
    %v849 = vunpack.c.h.b16 %v278
    %v850 = vunpack.c.l.b16 %v279
    %v851 = vunpack.c.h.b16 %v279
    %v852 = vunpack.c.l.b16 %v280
    %v853 = vunpack.c.h.b16 %v280
    %v854 = vunpack.c.l.b16 %v281
    %v855 = vunpack.c.h.b16 %v281
    %v856 = vunpack.c.l.b16 %v282
    %v857 = vunpack.c.h.b16 %v282
    %v858 = vunpack.c.l.b16 %v283
    %v859 = vunpack.c.h.b16 %v283
    %v860 = vunpack.c.l.b16 %v284
    %v861 = vunpack.c.h.b16 %v284
    %v862 = vunpack.c.l.b16 %v285
    %v863 = vunpack.c.h.b16 %v285
    %v864 = vunpack.c.l.b16 %v286
    %v865 = vunpack.c.h.b16 %v286
    %v866 = vunpack.c.l.b16 %v287
    %v867 = vunpack.c.h.b16 %v287
    %v868 = vunpack.c.l.b16 %v288
    %v869 = vunpack.c.h.b16 %v288
    %v870 = vunpack.c.l.b16 %v289
    %v871 = vunpack.c.h.b16 %v289
    %v872 = vunpack.c.l.b16 %v290
    %v873 = vunpack.c.h.b16 %v290
    %v874 = vunpack.c.l.b16 %v291
    %v875 = vunpack.c.h.b16 %v291
    %v876 = vunpack.c.l.b16 %v292
    %v877 = vunpack.c.h.b16 %v292
    %v878 = vunpack.c.l.b16 %v293
    %v879 = vunpack.c.h.b16 %v293
    %v880 = vunpack.c.l.b16 %v294
    %v881 = vunpack.c.h.b16 %v294
    %v882 = vunpack.c.l.b16 %v295
    %v883 = vunpack.c.h.b16 %v295
    %v884 = vunpack.c.l.b16 %v296
    %v885 = vunpack.c.h.b16 %v296
    %v886 = vunpack.c.l.b16 %v297
    %v887 = vunpack.c.h.b16 %v297
    %v888 = vunpack.c.l.b16 %v298
    %v889 = vunpack.c.h.b16 %v298
    %v890 = vunpack.c.l.b16 %v299
    %v891 = vunpack.c.h.b16 %v299
    %v892 = vunpack.c.l.b16 %v300
    %v893 = vunpack.c.h.b16 %v300
    %v894 = vunpack.c.l.b16 %v301
    %v895 = vunpack.c.h.b16 %v301
    %v896 = vunpack.c.l.b16 %v302
    %v897 = vunpack.c.h.b16 %v302
    %v898 = vunpack.c.l.b16 %v303
    %v899 = vunpack.c.h.b16 %v303
    %v900 = vunpack.c.l.b16 %v304
    %v901 = vunpack.c.h.b16 %v304
    %v902 = vunpack.c.l.b16 %v305
    %v903 = vunpack.c.h.b16 %v305
    %v904 = vunpack.c.l.b16 %v306
    %v905 = vunpack.c.h.b16 %v306
    %v906 = vunpack.c.l.b16 %v307
    %v907 = vunpack.c.h.b16 %v307
    %v908 = vunpack.c.l.b16 %v308
    %v909 = vunpack.c.h.b16 %v308
    %v910 = vunpack.c.l.b16 %v309
    %v911 = vunpack.c.h.b16 %v309
    %v912 = vunpack.c.l.b16 %v310
    %v913 = vunpack.c.h.b16 %v310
    %v914 = vunpack.c.l.b16 %v311
    %v915 = vunpack.c.h.b16 %v311
    %v916 = vunpack.c.l.b16 %v312
    %v917 = vunpack.c.h.b16 %v312
    %v918 = vunpack.c.l.b16 %v313
    %v919 = vunpack.c.h.b16 %v313
    %v920 = vpack.c.b16 %v540, %v536
    %v921 = vpack.c.b16 %v541, %v537
    %v922 = vpack.c.b16 %v542, %v538
    %v923 = vpack.c.b16 %v543, %v539
    %v924 = vpack.c.b16 %v548, %v544
    %v925 = vpack.c.b16 %v549, %v545
    %v926 = vpack.c.b16 %v550, %v546
    %v927 = vpack.c.b16 %v551, %v547
    %v928 = vpack.c.b16 %v556, %v552
    %v929 = vpack.c.b16 %v557, %v553
    %v930 = vpack.c.b16 %v558, %v554
    %v931 = vpack.c.b16 %v559, %v555
    %v932 = vpack.c.b16 %v564, %v560
    %v933 = vpack.c.b16 %v565, %v561
    %v934 = vpack.c.b16 %v566, %v562
    %v935 = vpack.c.b16 %v567, %v563
    %v936 = vpack.c.b16 %v572, %v568
    %v937 = vpack.c.b16 %v573, %v569
    %v938 = vpack.c.b16 %v574, %v570
    %v939 = vpack.c.b16 %v575, %v571
    %v940 = vpack.c.b16 %v580, %v576
    %v941 = vpack.c.b16 %v581, %v577
    %v942 = vpack.c.b16 %v582, %v578
    %v943 = vpack.c.b16 %v583, %v579
    %v944 = vpack.c.b16 %v588, %v584
    %v945 = vpack.c.b16 %v589, %v585
    %v946 = vpack.c.b16 %v590, %v586
    %v947 = vpack.c.b16 %v591, %v587
    %v948 = vpack.c.b16 %v596, %v592
    %v949 = vpack.c.b16 %v597, %v593
    %v950 = vpack.c.b16 %v598, %v594
    %v951 = vpack.c.b16 %v599, %v595
    %v952 = vpack.c.b16 %v604, %v600
    %v953 = vpack.c.b16 %v605, %v601
    %v954 = vpack.c.b16 %v606, %v602
    %v955 = vpack.c.b16 %v607, %v603
    %v956 = vpack.c.b16 %v612, %v608
    %v957 = vpack.c.b16 %v613, %v609
    %v958 = vpack.c.b16 %v614, %v610
    %v959 = vpack.c.b16 %v615, %v611
    %v960 = vpack.c.b16 %v620, %v616
    %v961 = vpack.c.b16 %v621, %v617
    %v962 = vpack.c.b16 %v622, %v618
    %v963 = vpack.c.b16 %v623, %v619
    %v964 = vpack.c.b16 %v628, %v624
    %v965 = vpack.c.b16 %v629, %v625
    %v966 = vpack.c.b16 %v630, %v626
    %v967 = vpack.c.b16 %v631, %v627
    %v968 = vpack.c.b16 %v636, %v632
    %v969 = vpack.c.b16 %v637, %v633
    %v970 = vpack.c.b16 %v638, %v634
    %v971 = vpack.c.b16 %v639, %v635
    %v972 = vpack.c.b16 %v644, %v640
    %v973 = vpack.c.b16 %v645, %v641
    %v974 = vpack.c.b16 %v646, %v642
    %v975 = vpack.c.b16 %v647, %v643
    %v976 = vpack.c.b16 %v652, %v648
    %v977 = vpack.c.b16 %v653, %v649
    %v978 = vpack.c.b16 %v654, %v650
    %v979 = vpack.c.b16 %v655, %v651
    %v980 = vpack.c.b16 %v660, %v656
    %v981 = vpack.c.b16 %v661, %v657
    %v982 = vpack.c.b16 %v662, %v658
    %v983 = vpack.c.b16 %v663, %v659
    %v984 = vpack.c.b16 %v668, %v664
    %v985 = vpack.c.b16 %v669, %v665
    %v986 = vpack.c.b16 %v670, %v666
    %v987 = vpack.c.b16 %v671, %v667
    %v988 = vpack.c.b16 %v676, %v672
    %v989 = vpack.c.b16 %v677, %v673
    %v990 = vpack.c.b16 %v678, %v674
    %v991 = vpack.c.b16 %v679, %v675
    %v992 = vpack.c.b16 %v684, %v680
    %v993 = vpack.c.b16 %v685, %v681
    %v994 = vpack.c.b16 %v686, %v682
    %v995 = vpack.c.b16 %v687, %v683
    %v996 = vpack.c.b16 %v692, %v688
    %v997 = vpack.c.b16 %v693, %v689
    %v998 = vpack.c.b16 %v694, %v690
    %v999 = vpack.c.b16 %v695, %v691
    %v1000 = vpack.c.b16 %v700, %v696
    %v1001 = vpack.c.b16 %v701, %v697
    %v1002 = vpack.c.b16 %v702, %v698
    %v1003 = vpack.c.b16 %v703, %v699
    %v1004 = vpack.c.b16 %v708, %v704
    %v1005 = vpack.c.b16 %v709, %v705
    %v1006 = vpack.c.b16 %v710, %v706
    %v1007 = vpack.c.b16 %v711, %v707
    %v1008 = vpack.c.b16 %v716, %v712
    %v1009 = vpack.c.b16 %v717, %v713
    %v1010 = vpack.c.b16 %v718, %v714
    %v1011 = vpack.c.b16 %v719, %v715
    %v1012 = vpack.c.b16 %v724, %v720
    %v1013 = vpack.c.b16 %v725, %v721
    %v1014 = vpack.c.b16 %v726, %v722
    %v1015 = vpack.c.b16 %v727, %v723
    %v1016 = vpack.c.b16 %v732, %v728
    %v1017 = vpack.c.b16 %v733, %v729
    %v1018 = vpack.c.b16 %v734, %v730
    %v1019 = vpack.c.b16 %v735, %v731
    %v1020 = vpack.c.b16 %v740, %v736
    %v1021 = vpack.c.b16 %v741, %v737
    %v1022 = vpack.c.b16 %v742, %v738
    %v1023 = vpack.c.b16 %v743, %v739
    %v1024 = vpack.c.b16 %v748, %v744
    %v1025 = vpack.c.b16 %v749, %v745
    %v1026 = vpack.c.b16 %v750, %v746
    %v1027 = vpack.c.b16 %v751, %v747
    %v1028 = vpack.c.b16 %v756, %v752
    %v1029 = vpack.c.b16 %v757, %v753
    %v1030 = vpack.c.b16 %v758, %v754
    %v1031 = vpack.c.b16 %v759, %v755
    %v1032 = vpack.c.b16 %v764, %v760
    %v1033 = vpack.c.b16 %v765, %v761
    %v1034 = vpack.c.b16 %v766, %v762
    %v1035 = vpack.c.b16 %v767, %v763
    %v1036 = vpack.c.b16 %v772, %v768
    %v1037 = vpack.c.b16 %v773, %v769
    %v1038 = vpack.c.b16 %v774, %v770
    %v1039 = vpack.c.b16 %v775, %v771
    %v1040 = vpack.c.b16 %v780, %v776
    %v1041 = vpack.c.b16 %v781, %v777
    %v1042 = vpack.c.b16 %v782, %v778
    %v1043 = vpack.c.b16 %v783, %v779
    %v1044 = vpack.c.b16 %v788, %v784
    %v1045 = vpack.c.b16 %v789, %v785
    %v1046 = vpack.c.b16 %v790, %v786
    %v1047 = vpack.c.b16 %v791, %v787
    %v1048 = vpack.c.b16 %v796, %v792
    %v1049 = vpack.c.b16 %v797, %v793
    %v1050 = vpack.c.b16 %v798, %v794
    %v1051 = vpack.c.b16 %v799, %v795
    %v1052 = vpack.c.b16 %v804, %v800
    %v1053 = vpack.c.b16 %v805, %v801
    %v1054 = vpack.c.b16 %v806, %v802
    %v1055 = vpack.c.b16 %v807, %v803
    %v1056 = vpack.c.b16 %v812, %v808
    %v1057 = vpack.c.b16 %v813, %v809
    %v1058 = vpack.c.b16 %v814, %v810
    %v1059 = vpack.c.b16 %v815, %v811
    %v1060 = vpack.c.b16 %v820, %v816
    %v1061 = vpack.c.b16 %v821, %v817
    %v1062 = vpack.c.b16 %v822, %v818
    %v1063 = vpack.c.b16 %v823, %v819
    %v1064 = vpack.c.b16 %v828, %v824
    %v1065 = vpack.c.b16 %v829, %v825
    %v1066 = vpack.c.b16 %v830, %v826
    %v1067 = vpack.c.b16 %v831, %v827
    %v1068 = vpack.c.b16 %v836, %v832
    %v1069 = vpack.c.b16 %v837, %v833
    %v1070 = vpack.c.b16 %v838, %v834
    %v1071 = vpack.c.b16 %v839, %v835
    %v1072 = vpack.c.b16 %v844, %v840
    %v1073 = vpack.c.b16 %v845, %v841
    %v1074 = vpack.c.b16 %v846, %v842
    %v1075 = vpack.c.b16 %v847, %v843
    %v1076 = vpack.c.b16 %v852, %v848
    %v1077 = vpack.c.b16 %v853, %v849
    %v1078 = vpack.c.b16 %v854, %v850
    %v1079 = vpack.c.b16 %v855, %v851
    %v1080 = vpack.c.b16 %v860, %v856
    %v1081 = vpack.c.b16 %v861, %v857
    %v1082 = vpack.c.b16 %v862, %v858
    %v1083 = vpack.c.b16 %v863, %v859
    %v1084 = vpack.c.b16 %v868, %v864
    %v1085 = vpack.c.b16 %v869, %v865
    %v1086 = vpack.c.b16 %v870, %v866
    %v1087 = vpack.c.b16 %v871, %v867
    %v1088 = vpack.c.b16 %v876, %v872
    %v1089 = vpack.c.b16 %v877, %v873
    %v1090 = vpack.c.b16 %v878, %v874
    %v1091 = vpack.c.b16 %v879, %v875
    %v1092 = vpack.c.b16 %v884, %v880
    %v1093 = vpack.c.b16 %v885, %v881
    %v1094 = vpack.c.b16 %v886, %v882
    %v1095 = vpack.c.b16 %v887, %v883
    %v1096 = vpack.c.b16 %v892, %v888
    %v1097 = vpack.c.b16 %v893, %v889
    %v1098 = vpack.c.b16 %v894, %v890
    %v1099 = vpack.c.b16 %v895, %v891
    %v1100 = vpack.c.b16 %v900, %v896
    %v1101 = vpack.c.b16 %v901, %v897
    %v1102 = vpack.c.b16 %v902, %v898
    %v1103 = vpack.c.b16 %v903, %v899
    %v1104 = vpack.c.b16 %v908, %v904
    %v1105 = vpack.c.b16 %v909, %v905
    %v1106 = vpack.c.b16 %v910, %v906
    %v1107 = vpack.c.b16 %v911, %v907
    %v1108 = vpack.c.b16 %v916, %v912
    %v1109 = vpack.c.b16 %v917, %v913
    %v1110 = vpack.c.b16 %v918, %v914
    %v1111 = vpack.c.b16 %v919, %v915
    %1304 = vmatprep.subr.bf16.mxu0 %v949
    %1305 = vmatpush1.bf16.msra.mxu0 %v948
    %1306 = vmatprep.subr.bf16.mxu0 %v945
    %1307 = vmatpush1.bf16.msra.mxu0 %v944
    %1308 = vmatprep.subr.bf16.mxu0 %v941
    %1309 = vmatpush1.bf16.msra.mxu0 %v940
    %1310 = vmatprep.subr.bf16.mxu0 %v937
    %1311 = vmatpush1.bf16.msra.mxu0 %v936
    %1312 = vmatprep.subr.bf16.mxu0 %v933
    %1313 = vmatpush1.bf16.msra.mxu0 %v932
    %1314 = vmatprep.subr.bf16.mxu0 %v929
    %1315 = vmatpush1.bf16.msra.mxu0 %v928
    %1316 = vmatprep.subr.bf16.mxu0 %v925
    %1317 = vmatpush1.bf16.msra.mxu0 %v924
    %1318 = vmatprep.subr.bf16.mxu0 %v921
    %1319 = vmatpush1.bf16.msra.mxu0 %v920
    %1320 = vmatprep.subr.bf16.mxu0 %v981
    %1321 = vmatpush2.bf16.msra.mxu0 %v980
    %1322 = vmatprep.subr.bf16.mxu0 %v977
    %1323 = vmatpush2.bf16.msra.mxu0 %v976
    %1324 = vmatprep.subr.bf16.mxu0 %v973
    %1325 = vmatpush2.bf16.msra.mxu0 %v972
    %1326 = vmatprep.subr.bf16.mxu0 %v969
    %1327 = vmatpush2.bf16.msra.mxu0 %v968
    %1328 = vmatprep.subr.bf16.mxu0 %v965
    %1329 = vmatpush2.bf16.msra.mxu0 %v964
    %1330 = vmatprep.subr.bf16.mxu0 %v961
    %1331 = vmatpush2.bf16.msra.mxu0 %v960
    %1332 = vmatprep.subr.bf16.mxu0 %v957
    %1333 = vmatpush2.bf16.msra.mxu0 %v956
    %1334 = vmatprep.subr.bf16.mxu0 %v953
    %1335 = vmatpush2.bf16.msra.mxu0 %v952
    %1336 = vmatprep.mubr.bf16.mxu0 %v333
    %1337 = vmatmul.mubr.bf16.gmra.mxu0 %v332
    %v1338 = vpop.f32.mrf.mxu0
    %v1339 = vadd.f32 0.0, %v1338
    %v1340 = vpop.f32.mrf.mxu0
    %v1341 = vadd.f32 0.0, %v1340
    %v1342 = vpop.f32.mrf.mxu0
    %v1343 = vadd.f32 0.0, %v1342
    %v1344 = vpop.f32.mrf.mxu0
    %v1345 = vadd.f32 0.0, %v1344
    %1346 = vdwg.mxu0
    %1347 = vmatprep.subr.bf16.mxu0 %v1013
    %1348 = vmatpush1.bf16.msra.mxu0 %v1012
    %1349 = vmatprep.subr.bf16.mxu0 %v1009
    %1350 = vmatpush1.bf16.msra.mxu0 %v1008
    %1351 = vmatprep.subr.bf16.mxu0 %v1005
    %1352 = vmatpush1.bf16.msra.mxu0 %v1004
    %1353 = vmatprep.subr.bf16.mxu0 %v1001
    %1354 = vmatpush1.bf16.msra.mxu0 %v1000
    %1355 = vmatprep.subr.bf16.mxu0 %v997
    %1356 = vmatpush1.bf16.msra.mxu0 %v996
    %1357 = vmatprep.subr.bf16.mxu0 %v993
    %1358 = vmatpush1.bf16.msra.mxu0 %v992
    %1359 = vmatprep.subr.bf16.mxu0 %v989
    %1360 = vmatpush1.bf16.msra.mxu0 %v988
    %1361 = vmatprep.subr.bf16.mxu0 %v985
    %1362 = vmatpush1.bf16.msra.mxu0 %v984
    %1363 = vmatprep.subr.bf16.mxu0 %v1045
    %1364 = vmatpush2.bf16.msra.mxu0 %v1044
    %1365 = vmatprep.subr.bf16.mxu0 %v1041
    %1366 = vmatpush2.bf16.msra.mxu0 %v1040
    %1367 = vmatprep.subr.bf16.mxu0 %v1037
    %1368 = vmatpush2.bf16.msra.mxu0 %v1036
    %1369 = vmatprep.subr.bf16.mxu0 %v1033
    %1370 = vmatpush2.bf16.msra.mxu0 %v1032
    %1371 = vmatprep.subr.bf16.mxu0 %v1029
    %1372 = vmatpush2.bf16.msra.mxu0 %v1028
    %1373 = vmatprep.subr.bf16.mxu0 %v1025
    %1374 = vmatpush2.bf16.msra.mxu0 %v1024
    %1375 = vmatprep.subr.bf16.mxu0 %v1021
    %1376 = vmatpush2.bf16.msra.mxu0 %v1020
    %1377 = vmatprep.subr.bf16.mxu0 %v1017
    %1378 = vmatpush2.bf16.msra.mxu0 %v1016
    %1379 = vmatprep.mubr.bf16.mxu0 %v335
    %1380 = vmatmul.mubr.bf16.gmra.mxu0 %v334
    %v1381 = vpop.f32.mrf.mxu0
    %v1382 = vadd.f32 %v1339, %v1381
    %v1383 = vpop.f32.mrf.mxu0
    %v1384 = vadd.f32 %v1341, %v1383
    %v1385 = vpop.f32.mrf.mxu0
    %v1386 = vadd.f32 %v1343, %v1385
    %v1387 = vpop.f32.mrf.mxu0
    %v1388 = vadd.f32 %v1345, %v1387
    %1389 = vdwg.mxu0
    %1390 = vmatprep.subr.bf16.mxu0 %v1077
    %1391 = vmatpush1.bf16.msra.mxu0 %v1076
    %1392 = vmatprep.subr.bf16.mxu0 %v1073
    %1393 = vmatpush1.bf16.msra.mxu0 %v1072
    %1394 = vmatprep.subr.bf16.mxu0 %v1069
    %1395 = vmatpush1.bf16.msra.mxu0 %v1068
    %1396 = vmatprep.subr.bf16.mxu0 %v1065
    %1397 = vmatpush1.bf16.msra.mxu0 %v1064
    %1398 = vmatprep.subr.bf16.mxu0 %v1061
    %1399 = vmatpush1.bf16.msra.mxu0 %v1060
    %1400 = vmatprep.subr.bf16.mxu0 %v1057
    %1401 = vmatpush1.bf16.msra.mxu0 %v1056
    %1402 = vmatprep.subr.bf16.mxu0 %v1053
    %1403 = vmatpush1.bf16.msra.mxu0 %v1052
    %1404 = vmatprep.subr.bf16.mxu0 %v1049
    %1405 = vmatpush1.bf16.msra.mxu0 %v1048
    %1406 = vmatprep.subr.bf16.mxu0 %v1109
    %1407 = vmatpush2.bf16.msra.mxu0 %v1108
    %1408 = vmatprep.subr.bf16.mxu0 %v1105
    %1409 = vmatpush2.bf16.msra.mxu0 %v1104
    %1410 = vmatprep.subr.bf16.mxu0 %v1101
    %1411 = vmatpush2.bf16.msra.mxu0 %v1100
    %1412 = vmatprep.subr.bf16.mxu0 %v1097
    %1413 = vmatpush2.bf16.msra.mxu0 %v1096
    %1414 = vmatprep.subr.bf16.mxu0 %v1093
    %1415 = vmatpush2.bf16.msra.mxu0 %v1092
    %1416 = vmatprep.subr.bf16.mxu0 %v1089
    %1417 = vmatpush2.bf16.msra.mxu0 %v1088
    %1418 = vmatprep.subr.bf16.mxu0 %v1085
    %1419 = vmatpush2.bf16.msra.mxu0 %v1084
    %1420 = vmatprep.subr.bf16.mxu0 %v1081
    %1421 = vmatpush2.bf16.msra.mxu0 %v1080
    %1422 = vmatprep.mubr.bf16.mxu0 %v337
    %1423 = vmatmul.mubr.bf16.gmra.mxu0 %v336
    %v1424 = vpop.f32.mrf.mxu0
    %v1425 = vadd.f32 %v1382, %v1424
    %v1426 = vpop.f32.mrf.mxu0
    %v1427 = vadd.f32 %v1384, %v1426
    %v1428 = vpop.f32.mrf.mxu0
    %v1429 = vadd.f32 %v1386, %v1428
    %v1430 = vpop.f32.mrf.mxu0
    %v1431 = vadd.f32 %v1388, %v1430
    %1432 = vdwg.mxu0
    %1433 = vmatprep.subr.bf16.mxu0 %v951
    %1434 = vmatpush1.bf16.msra.mxu0 %v950
    %1435 = vmatprep.subr.bf16.mxu0 %v947
    %1436 = vmatpush1.bf16.msra.mxu0 %v946
    %1437 = vmatprep.subr.bf16.mxu0 %v943
    %1438 = vmatpush1.bf16.msra.mxu0 %v942
    %1439 = vmatprep.subr.bf16.mxu0 %v939
    %1440 = vmatpush1.bf16.msra.mxu0 %v938
    %1441 = vmatprep.subr.bf16.mxu0 %v935
    %1442 = vmatpush1.bf16.msra.mxu0 %v934
    %1443 = vmatprep.subr.bf16.mxu0 %v931
    %1444 = vmatpush1.bf16.msra.mxu0 %v930
    %1445 = vmatprep.subr.bf16.mxu0 %v927
    %1446 = vmatpush1.bf16.msra.mxu0 %v926
    %1447 = vmatprep.subr.bf16.mxu0 %v923
    %1448 = vmatpush1.bf16.msra.mxu0 %v922
    %1449 = vmatprep.subr.bf16.mxu0 %v983
    %1450 = vmatpush2.bf16.msra.mxu0 %v982
    %1451 = vmatprep.subr.bf16.mxu0 %v979
    %1452 = vmatpush2.bf16.msra.mxu0 %v978
    %1453 = vmatprep.subr.bf16.mxu0 %v975
    %1454 = vmatpush2.bf16.msra.mxu0 %v974
    %1455 = vmatprep.subr.bf16.mxu0 %v971
    %1456 = vmatpush2.bf16.msra.mxu0 %v970
    %1457 = vmatprep.subr.bf16.mxu0 %v967
    %1458 = vmatpush2.bf16.msra.mxu0 %v966
    %1459 = vmatprep.subr.bf16.mxu0 %v963
    %1460 = vmatpush2.bf16.msra.mxu0 %v962
    %1461 = vmatprep.subr.bf16.mxu0 %v959
    %1462 = vmatpush2.bf16.msra.mxu0 %v958
    %1463 = vmatprep.subr.bf16.mxu0 %v955
    %1464 = vmatpush2.bf16.msra.mxu0 %v954
    %1465 = vmatprep.mubr.bf16.mxu0 %v333
    %1466 = vmatmul.mubr.bf16.gmra.mxu0 %v332
    %v1467 = vpop.f32.mrf.mxu0
    %v1468 = vadd.f32 0.0, %v1467
    %v1469 = vpop.f32.mrf.mxu0
    %v1470 = vadd.f32 0.0, %v1469
    %v1471 = vpop.f32.mrf.mxu0
    %v1472 = vadd.f32 0.0, %v1471
    %v1473 = vpop.f32.mrf.mxu0
    %v1474 = vadd.f32 0.0, %v1473
    %1475 = vdwg.mxu0
    %1476 = vmatprep.subr.bf16.mxu0 %v1015
    %1477 = vmatpush1.bf16.msra.mxu0 %v1014
    %1478 = vmatprep.subr.bf16.mxu0 %v1011
    %1479 = vmatpush1.bf16.msra.mxu0 %v1010
    %1480 = vmatprep.subr.bf16.mxu0 %v1007
    %1481 = vmatpush1.bf16.msra.mxu0 %v1006
    %1482 = vmatprep.subr.bf16.mxu0 %v1003
    %1483 = vmatpush1.bf16.msra.mxu0 %v1002
    %1484 = vmatprep.subr.bf16.mxu0 %v999
    %1485 = vmatpush1.bf16.msra.mxu0 %v998
    %1486 = vmatprep.subr.bf16.mxu0 %v995
    %1487 = vmatpush1.bf16.msra.mxu0 %v994
    %1488 = vmatprep.subr.bf16.mxu0 %v991
    %1489 = vmatpush1.bf16.msra.mxu0 %v990
    %1490 = vmatprep.subr.bf16.mxu0 %v987
    %1491 = vmatpush1.bf16.msra.mxu0 %v986
    %1492 = vmatprep.subr.bf16.mxu0 %v1047
    %1493 = vmatpush2.bf16.msra.mxu0 %v1046
    %1494 = vmatprep.subr.bf16.mxu0 %v1043
    %1495 = vmatpush2.bf16.msra.mxu0 %v1042
    %1496 = vmatprep.subr.bf16.mxu0 %v1039
    %1497 = vmatpush2.bf16.msra.mxu0 %v1038
    %1498 = vmatprep.subr.bf16.mxu0 %v1035
    %1499 = vmatpush2.bf16.msra.mxu0 %v1034
    %1500 = vmatprep.subr.bf16.mxu0 %v1031
    %1501 = vmatpush2.bf16.msra.mxu0 %v1030
    %1502 = vmatprep.subr.bf16.mxu0 %v1027
    %1503 = vmatpush2.bf16.msra.mxu0 %v1026
    %1504 = vmatprep.subr.bf16.mxu0 %v1023
    %1505 = vmatpush2.bf16.msra.mxu0 %v1022
    %1506 = vmatprep.subr.bf16.mxu0 %v1019
    %1507 = vmatpush2.bf16.msra.mxu0 %v1018
    %1508 = vmatprep.mubr.bf16.mxu0 %v335
    %1509 = vmatmul.mubr.bf16.gmra.mxu0 %v334
    %v1510 = vpop.f32.mrf.mxu0
    %v1511 = vadd.f32 %v1468, %v1510
    %v1512 = vpop.f32.mrf.mxu0
    %v1513 = vadd.f32 %v1470, %v1512
    %v1514 = vpop.f32.mrf.mxu0
    %v1515 = vadd.f32 %v1472, %v1514
    %v1516 = vpop.f32.mrf.mxu0
    %v1517 = vadd.f32 %v1474, %v1516
    %1518 = vdwg.mxu0
    %1519 = vmatprep.subr.bf16.mxu0 %v1079
    %1520 = vmatpush1.bf16.msra.mxu0 %v1078
    %1521 = vmatprep.subr.bf16.mxu0 %v1075
    %1522 = vmatpush1.bf16.msra.mxu0 %v1074
    %1523 = vmatprep.subr.bf16.mxu0 %v1071
    %1524 = vmatpush1.bf16.msra.mxu0 %v1070
    %1525 = vmatprep.subr.bf16.mxu0 %v1067
    %1526 = vmatpush1.bf16.msra.mxu0 %v1066
    %1527 = vmatprep.subr.bf16.mxu0 %v1063
    %1528 = vmatpush1.bf16.msra.mxu0 %v1062
    %1529 = vmatprep.subr.bf16.mxu0 %v1059
    %1530 = vmatpush1.bf16.msra.mxu0 %v1058
    %1531 = vmatprep.subr.bf16.mxu0 %v1055
    %1532 = vmatpush1.bf16.msra.mxu0 %v1054
    %1533 = vmatprep.subr.bf16.mxu0 %v1051
    %1534 = vmatpush1.bf16.msra.mxu0 %v1050
    %1535 = vmatprep.subr.bf16.mxu0 %v1111
    %1536 = vmatpush2.bf16.msra.mxu0 %v1110
    %1537 = vmatprep.subr.bf16.mxu0 %v1107
    %1538 = vmatpush2.bf16.msra.mxu0 %v1106
    %1539 = vmatprep.subr.bf16.mxu0 %v1103
    %1540 = vmatpush2.bf16.msra.mxu0 %v1102
    %1541 = vmatprep.subr.bf16.mxu0 %v1099
    %1542 = vmatpush2.bf16.msra.mxu0 %v1098
    %1543 = vmatprep.subr.bf16.mxu0 %v1095
    %1544 = vmatpush2.bf16.msra.mxu0 %v1094
    %1545 = vmatprep.subr.bf16.mxu0 %v1091
    %1546 = vmatpush2.bf16.msra.mxu0 %v1090
    %1547 = vmatprep.subr.bf16.mxu0 %v1087
    %1548 = vmatpush2.bf16.msra.mxu0 %v1086
    %1549 = vmatprep.subr.bf16.mxu0 %v1083
    %1550 = vmatpush2.bf16.msra.mxu0 %v1082
    %1551 = vmatprep.mubr.bf16.mxu0 %v337
    %1552 = vmatmul.mubr.bf16.gmra.mxu0 %v336
    %v1553 = vpop.f32.mrf.mxu0
    %v1554 = vadd.f32 %v1511, %v1553
    %v1555 = vpop.f32.mrf.mxu0
    %v1556 = vadd.f32 %v1513, %v1555
    %v1557 = vpop.f32.mrf.mxu0
    %v1558 = vadd.f32 %v1515, %v1557
    %v1559 = vpop.f32.mrf.mxu0
    %v1560 = vadd.f32 %v1517, %v1559
    %1561 = vdwg.mxu0
    %v1562 = vadd.f32 %v108, %v1425
    %v1563 = vadd.f32 %v109, %v1427
    %v1564 = vadd.f32 %v110, %v1554
    %v1565 = vadd.f32 %v111, %v1556
    %v1566 = vadd.f32 %v112, %v1429
    %v1567 = vadd.f32 %v113, %v1431
    %v1568 = vadd.f32 %v114, %v1558
    %v1569 = vadd.f32 %v115, %v1560
    %1570 = vst [vmem:[#allocation2] sm:$0xff] %v1562
    %1571 = vst [vmem:[#allocation2 + $0x8] sm:$0xff] %v1563
    %1572 = vst [vmem:[#allocation2 + $0x10] sm:$0xff] %v1564
    %1573 = vst [vmem:[#allocation2 + $0x18] sm:$0xff] %v1565
    %1574 = vst [vmem:[#allocation2 + $0x20] sm:$0xff] %v1566
    %1575 = vst [vmem:[#allocation2 + $0x28] sm:$0xff] %v1567
    %1576 = vst [vmem:[#allocation2 + $0x30] sm:$0xff] %v1568
    %1577 = vst [vmem:[#allocation2 + $0x38] sm:$0xff] %v1569
    // Predicated region
    $region54: #{tpu_custom_call.1} parent=1 // pred_check
      %p1578 = pneg %p96
    $region55: #{tpu_custom_call.1} parent=1 // pred_check_branch
      %1580 = sbr.rel (%p1578) target = $region57
    $region56: #{tpu_custom_call.1} parent=1 // pred_region
      %v1581 = vld [vmem:[#allocation2] sm:$0xff]
      %v1582 = vld [vmem:[#allocation2 + $0x8] sm:$0xff]
      %v1583 = vld [vmem:[#allocation2 + $0x10] sm:$0xff]
      %v1584 = vld [vmem:[#allocation2 + $0x18] sm:$0xff]
      %v1585 = vld [vmem:[#allocation2 + $0x20] sm:$0xff]
      %v1586 = vld [vmem:[#allocation2 + $0x28] sm:$0xff]
      %v1587 = vld [vmem:[#allocation2 + $0x30] sm:$0xff]
      %v1588 = vld [vmem:[#allocation2 + $0x38] sm:$0xff]
      %v1589 = vmul.f32 %v1581, %v1581
      %v1590 = vmul.f32 %v1582, %v1582
      %v1591 = vmul.f32 %v1583, %v1583
      %v1592 = vmul.f32 %v1584, %v1584
      %v1593 = vmul.f32 %v1585, %v1585
      %v1594 = vmul.f32 %v1586, %v1586
      %v1595 = vmul.f32 %v1587, %v1587
      %v1596 = vmul.f32 %v1588, %v1588
      %v1597 = vadd.f32 %v1589, %v1590
      %v1598 = vadd.f32 %v1597, %v1591
      %v1599 = vadd.f32 %v1598, %v1592
      %1600 = vadd.xlane.f32.xlu0 %v1599
      %v1601 = vpop.xlane.xlu0 %1600
      %v1602 = vadd.f32 %v1593, %v1594
      %v1603 = vadd.f32 %v1602, %v1595
      %v1604 = vadd.f32 %v1603, %v1596
      %1605 = vadd.xlane.f32.xlu0 %v1604
      %v1606 = vpop.xlane.xlu0 %1605
      %v1607 = vadd.f32 %v1601, 1e-12
      %v1608 = vadd.f32 %v1606, 1e-12
      %v1609 = vrsqrt.pop %v1607
      %v1610 = vrsqrt.pop %v1608
      %v1611 = vmul.f32 %v1581, %v1609
      %v1612 = vmul.f32 %v1582, %v1609
      %v1613 = vmul.f32 %v1583, %v1609
      %v1614 = vmul.f32 %v1584, %v1609
      %v1615 = vmul.f32 %v1585, %v1610
      %v1616 = vmul.f32 %v1586, %v1610
      %v1617 = vmul.f32 %v1587, %v1610
      %v1618 = vmul.f32 %v1588, %v1610
      %v1619 = vld [vmem:[#allocation8] sm:$0xff]
      %v1620 = vld [vmem:[#allocation8 + $0x8] sm:$0xff]
      %v1621 = vld [vmem:[#allocation8 + $0x10] sm:$0xff]
      %v1622 = vld [vmem:[#allocation8 + $0x18] sm:$0xff]
      %v1623 = vunpack.c.l.bf16 %v1619
      %v1624 = vunpack.c.h.bf16 %v1619
      %v1625 = vunpack.c.l.bf16 %v1620
      %v1626 = vunpack.c.h.bf16 %v1620
      %v1627 = vunpack.c.l.bf16 %v1621
      %v1628 = vunpack.c.h.bf16 %v1621
      %v1629 = vunpack.c.l.bf16 %v1622
      %v1630 = vunpack.c.h.bf16 %v1622
      %v1631 = vmul.f32 %v1611, %v1623
      %v1632 = vmul.f32 %v1612, %v1624
      %v1633 = vmul.f32 %v1613, %v1625
      %v1634 = vmul.f32 %v1614, %v1626
      %v1635 = vmul.f32 %v1615, %v1627
      %v1636 = vmul.f32 %v1616, %v1628
      %v1637 = vmul.f32 %v1617, %v1629
      %v1638 = vmul.f32 %v1618, %v1630
      %v1639 = vpack.c.bf16 %v1635, %v1631
      %v1640 = vpack.c.bf16 %v1636, %v1632
      %v1641 = vpack.c.bf16 %v1637, %v1633
      %v1642 = vpack.c.bf16 %v1638, %v1634
      %v1643 = vld [vmem:[#allocation9] sm:$0xff]
      %v1644 = vld [vmem:[#allocation9 + $0x8] sm:$0xff]
      %v1645 = vld [vmem:[#allocation9 + $0x10] sm:$0xff]
      %v1646 = vld [vmem:[#allocation9 + $0x18] sm:$0xff]
      %v1647 = vld [vmem:[#allocation9 + $0x20] sm:$0xff]
      %v1648 = vld [vmem:[#allocation9 + $0x28] sm:$0xff]
      %v1649 = vld [vmem:[#allocation9 + $0x30] sm:$0xff]
      %v1650 = vld [vmem:[#allocation9 + $0x38] sm:$0xff]
      %v1651 = vld [vmem:[#allocation9 + $0x40] sm:$0xff]
      %v1652 = vld [vmem:[#allocation9 + $0x48] sm:$0xff]
      %v1653 = vld [vmem:[#allocation9 + $0x50] sm:$0xff]
      %v1654 = vld [vmem:[#allocation9 + $0x58] sm:$0xff]
      %v1655 = vld [vmem:[#allocation9 + $0x60] sm:$0xff]
      %v1656 = vld [vmem:[#allocation9 + $0x68] sm:$0xff]
      %v1657 = vld [vmem:[#allocation9 + $0x70] sm:$0xff]
      %v1658 = vld [vmem:[#allocation9 + $0x78] sm:$0xff]
      %v1659 = vld [vmem:[#allocation9 + $0x80] sm:$0xff]
      %v1660 = vld [vmem:[#allocation9 + $0x88] sm:$0xff]
      %v1661 = vld [vmem:[#allocation9 + $0x90] sm:$0xff]
      %v1662 = vld [vmem:[#allocation9 + $0x98] sm:$0xff]
      %v1663 = vld [vmem:[#allocation9 + $0xa0] sm:$0xff]
      %v1664 = vld [vmem:[#allocation9 + $0xa8] sm:$0xff]
      %v1665 = vld [vmem:[#allocation9 + $0xb0] sm:$0xff]
      %v1666 = vld [vmem:[#allocation9 + $0xb8] sm:$0xff]
      %v1667 = vld [vmem:[#allocation9 + $0xc0] sm:$0xff]
      %v1668 = vld [vmem:[#allocation9 + $0xc8] sm:$0xff]
      %v1669 = vld [vmem:[#allocation9 + $0xd0] sm:$0xff]
      %v1670 = vld [vmem:[#allocation9 + $0xd8] sm:$0xff]
      %v1671 = vld [vmem:[#allocation9 + $0xe0] sm:$0xff]
      %v1672 = vld [vmem:[#allocation9 + $0xe8] sm:$0xff]
      %v1673 = vld [vmem:[#allocation9 + $0xf0] sm:$0xff]
      %v1674 = vld [vmem:[#allocation9 + $0xf8] sm:$0xff]
      %v1675 = vld [vmem:[#allocation9 + $0x100] sm:$0xff]
      %v1676 = vld [vmem:[#allocation9 + $0x108] sm:$0xff]
      %v1677 = vld [vmem:[#allocation9 + $0x110] sm:$0xff]
      %v1678 = vld [vmem:[#allocation9 + $0x118] sm:$0xff]
      %v1679 = vld [vmem:[#allocation9 + $0x120] sm:$0xff]
      %v1680 = vld [vmem:[#allocation9 + $0x128] sm:$0xff]
      %v1681 = vld [vmem:[#allocation9 + $0x130] sm:$0xff]
      %v1682 = vld [vmem:[#allocation9 + $0x138] sm:$0xff]
      %v1683 = vld [vmem:[#allocation9 + $0x140] sm:$0xff]
      %v1684 = vld [vmem:[#allocation9 + $0x148] sm:$0xff]
      %v1685 = vld [vmem:[#allocation9 + $0x150] sm:$0xff]
      %v1686 = vld [vmem:[#allocation9 + $0x158] sm:$0xff]
      %v1687 = vld [vmem:[#allocation9 + $0x160] sm:$0xff]
      %v1688 = vld [vmem:[#allocation9 + $0x168] sm:$0xff]
      %v1689 = vld [vmem:[#allocation9 + $0x170] sm:$0xff]
      %v1690 = vld [vmem:[#allocation9 + $0x178] sm:$0xff]
      %v1691 = vld [vmem:[#allocation9 + $0x180] sm:$0xff]
      %v1692 = vld [vmem:[#allocation9 + $0x188] sm:$0xff]
      %v1693 = vld [vmem:[#allocation9 + $0x190] sm:$0xff]
      %v1694 = vld [vmem:[#allocation9 + $0x198] sm:$0xff]
      %v1695 = vld [vmem:[#allocation9 + $0x1a0] sm:$0xff]
      %v1696 = vld [vmem:[#allocation9 + $0x1a8] sm:$0xff]
      %v1697 = vld [vmem:[#allocation9 + $0x1b0] sm:$0xff]
      %v1698 = vld [vmem:[#allocation9 + $0x1b8] sm:$0xff]
      %v1699 = vld [vmem:[#allocation9 + $0x1c0] sm:$0xff]
      %v1700 = vld [vmem:[#allocation9 + $0x1c8] sm:$0xff]
      %v1701 = vld [vmem:[#allocation9 + $0x1d0] sm:$0xff]
      %v1702 = vld [vmem:[#allocation9 + $0x1d8] sm:$0xff]
      %v1703 = vld [vmem:[#allocation9 + $0x1e0] sm:$0xff]
      %v1704 = vld [vmem:[#allocation9 + $0x1e8] sm:$0xff]
      %v1705 = vld [vmem:[#allocation9 + $0x1f0] sm:$0xff]
      %v1706 = vld [vmem:[#allocation9 + $0x1f8] sm:$0xff]
      %v1707 = vld [vmem:[#allocation9 + $0x200] sm:$0xff]
      %v1708 = vld [vmem:[#allocation9 + $0x208] sm:$0xff]
      %v1709 = vld [vmem:[#allocation9 + $0x210] sm:$0xff]
      %v1710 = vld [vmem:[#allocation9 + $0x218] sm:$0xff]
      %v1711 = vld [vmem:[#allocation9 + $0x220] sm:$0xff]
      %v1712 = vld [vmem:[#allocation9 + $0x228] sm:$0xff]
      %v1713 = vld [vmem:[#allocation9 + $0x230] sm:$0xff]
      %v1714 = vld [vmem:[#allocation9 + $0x238] sm:$0xff]
      %v1715 = vld [vmem:[#allocation9 + $0x240] sm:$0xff]
      %v1716 = vld [vmem:[#allocation9 + $0x248] sm:$0xff]
      %v1717 = vld [vmem:[#allocation9 + $0x250] sm:$0xff]
      %v1718 = vld [vmem:[#allocation9 + $0x258] sm:$0xff]
      %v1719 = vld [vmem:[#allocation9 + $0x260] sm:$0xff]
      %v1720 = vld [vmem:[#allocation9 + $0x268] sm:$0xff]
      %v1721 = vld [vmem:[#allocation9 + $0x270] sm:$0xff]
      %v1722 = vld [vmem:[#allocation9 + $0x278] sm:$0xff]
      %v1723 = vld [vmem:[#allocation9 + $0x280] sm:$0xff]
      %v1724 = vld [vmem:[#allocation9 + $0x288] sm:$0xff]
      %v1725 = vld [vmem:[#allocation9 + $0x290] sm:$0xff]
      %v1726 = vld [vmem:[#allocation9 + $0x298] sm:$0xff]
      %v1727 = vld [vmem:[#allocation9 + $0x2a0] sm:$0xff]
      %v1728 = vld [vmem:[#allocation9 + $0x2a8] sm:$0xff]
      %v1729 = vld [vmem:[#allocation9 + $0x2b0] sm:$0xff]
      %v1730 = vld [vmem:[#allocation9 + $0x2b8] sm:$0xff]
      %v1731 = vld [vmem:[#allocation9 + $0x2c0] sm:$0xff]
      %v1732 = vld [vmem:[#allocation9 + $0x2c8] sm:$0xff]
      %v1733 = vld [vmem:[#allocation9 + $0x2d0] sm:$0xff]
      %v1734 = vld [vmem:[#allocation9 + $0x2d8] sm:$0xff]
      %v1735 = vld [vmem:[#allocation9 + $0x2e0] sm:$0xff]
      %v1736 = vld [vmem:[#allocation9 + $0x2e8] sm:$0xff]
      %v1737 = vld [vmem:[#allocation9 + $0x2f0] sm:$0xff]
      %v1738 = vld [vmem:[#allocation9 + $0x2f8] sm:$0xff]
      %v1739 = vld [vmem:[#allocation9 + $0x300] sm:$0xff]
      %v1740 = vld [vmem:[#allocation9 + $0x308] sm:$0xff]
      %v1741 = vld [vmem:[#allocation9 + $0x310] sm:$0xff]
      %v1742 = vld [vmem:[#allocation9 + $0x318] sm:$0xff]
      %v1743 = vld [vmem:[#allocation9 + $0x320] sm:$0xff]
      %v1744 = vld [vmem:[#allocation9 + $0x328] sm:$0xff]
      %v1745 = vld [vmem:[#allocation9 + $0x330] sm:$0xff]
      %v1746 = vld [vmem:[#allocation9 + $0x338] sm:$0xff]
      %v1747 = vld [vmem:[#allocation9 + $0x340] sm:$0xff]
      %v1748 = vld [vmem:[#allocation9 + $0x348] sm:$0xff]
      %v1749 = vld [vmem:[#allocation9 + $0x350] sm:$0xff]
      %v1750 = vld [vmem:[#allocation9 + $0x358] sm:$0xff]
      %v1751 = vld [vmem:[#allocation9 + $0x360] sm:$0xff]
      %v1752 = vld [vmem:[#allocation9 + $0x368] sm:$0xff]
      %v1753 = vld [vmem:[#allocation9 + $0x370] sm:$0xff]
      %v1754 = vld [vmem:[#allocation9 + $0x378] sm:$0xff]
      %v1755 = vld [vmem:[#allocation9 + $0x380] sm:$0xff]
      %v1756 = vld [vmem:[#allocation9 + $0x388] sm:$0xff]
      %v1757 = vld [vmem:[#allocation9 + $0x390] sm:$0xff]
      %v1758 = vld [vmem:[#allocation9 + $0x398] sm:$0xff]
      %v1759 = vld [vmem:[#allocation9 + $0x3a0] sm:$0xff]
      %v1760 = vld [vmem:[#allocation9 + $0x3a8] sm:$0xff]
      %v1761 = vld [vmem:[#allocation9 + $0x3b0] sm:$0xff]
      %v1762 = vld [vmem:[#allocation9 + $0x3b8] sm:$0xff]
      %v1763 = vld [vmem:[#allocation9 + $0x3c0] sm:$0xff]
      %v1764 = vld [vmem:[#allocation9 + $0x3c8] sm:$0xff]
      %v1765 = vld [vmem:[#allocation9 + $0x3d0] sm:$0xff]
      %v1766 = vld [vmem:[#allocation9 + $0x3d8] sm:$0xff]
      %v1767 = vld [vmem:[#allocation9 + $0x3e0] sm:$0xff]
      %v1768 = vld [vmem:[#allocation9 + $0x3e8] sm:$0xff]
      %v1769 = vld [vmem:[#allocation9 + $0x3f0] sm:$0xff]
      %v1770 = vld [vmem:[#allocation9 + $0x3f8] sm:$0xff]
      %v1771 = vld [vmem:[%s4] sm:$0xf]
      %v1773 = vlaneseq
      %v1774 = vshrl.u32 %v1773, 7
      %v1775 = vsub.s32 0, %v1774
      %v1776 = vrot.slane %v1771, %v1775
      %v1777 = vlaneseq
      %v1778 = vshrl.u32 %v1777, 7
      %v1779 = vsub.s32 1, %v1778
      %v1780 = vrot.slane %v1771, %v1779
      %v1781 = vlaneseq
      %v1782 = vshrl.u32 %v1781, 7
      %v1783 = vsub.s32 2, %v1782
      %v1784 = vrot.slane %v1771, %v1783
      %v1785 = vlaneseq
      %v1786 = vshrl.u32 %v1785, 7
      %v1787 = vsub.s32 3, %v1786
      %v1788 = vrot.slane %v1771, %v1787
      %v1921 = vunpack.c.l.b16 %v1643
      %v1922 = vunpack.c.h.b16 %v1643
      %v1923 = vunpack.c.l.b16 %v1644
      %v1924 = vunpack.c.h.b16 %v1644
      %v1925 = vunpack.c.l.b16 %v1645
      %v1926 = vunpack.c.h.b16 %v1645
      %v1927 = vunpack.c.l.b16 %v1646
      %v1928 = vunpack.c.h.b16 %v1646
      %v1929 = vunpack.c.l.b16 %v1647
      %v1930 = vunpack.c.h.b16 %v1647
      %v1931 = vunpack.c.l.b16 %v1648
      %v1932 = vunpack.c.h.b16 %v1648
      %v1933 = vunpack.c.l.b16 %v1649
      %v1934 = vunpack.c.h.b16 %v1649
      %v1935 = vunpack.c.l.b16 %v1650
      %v1936 = vunpack.c.h.b16 %v1650
      %v1937 = vunpack.c.l.b16 %v1651
      %v1938 = vunpack.c.h.b16 %v1651
      %v1939 = vunpack.c.l.b16 %v1652
      %v1940 = vunpack.c.h.b16 %v1652
      %v1941 = vunpack.c.l.b16 %v1653
      %v1942 = vunpack.c.h.b16 %v1653
      %v1943 = vunpack.c.l.b16 %v1654
      %v1944 = vunpack.c.h.b16 %v1654
      %v1945 = vunpack.c.l.b16 %v1655
      %v1946 = vunpack.c.h.b16 %v1655
      %v1947 = vunpack.c.l.b16 %v1656
      %v1948 = vunpack.c.h.b16 %v1656
      %v1949 = vunpack.c.l.b16 %v1657
      %v1950 = vunpack.c.h.b16 %v1657
      %v1951 = vunpack.c.l.b16 %v1658
      %v1952 = vunpack.c.h.b16 %v1658
      %v1953 = vunpack.c.l.b16 %v1659
      %v1954 = vunpack.c.h.b16 %v1659
      %v1955 = vunpack.c.l.b16 %v1660
      %v1956 = vunpack.c.h.b16 %v1660
      %v1957 = vunpack.c.l.b16 %v1661
      %v1958 = vunpack.c.h.b16 %v1661
      %v1959 = vunpack.c.l.b16 %v1662
      %v1960 = vunpack.c.h.b16 %v1662
      %v1961 = vunpack.c.l.b16 %v1663
      %v1962 = vunpack.c.h.b16 %v1663
      %v1963 = vunpack.c.l.b16 %v1664
      %v1964 = vunpack.c.h.b16 %v1664
      %v1965 = vunpack.c.l.b16 %v1665
      %v1966 = vunpack.c.h.b16 %v1665
      %v1967 = vunpack.c.l.b16 %v1666
      %v1968 = vunpack.c.h.b16 %v1666
      %v1969 = vunpack.c.l.b16 %v1667
      %v1970 = vunpack.c.h.b16 %v1667
      %v1971 = vunpack.c.l.b16 %v1668
      %v1972 = vunpack.c.h.b16 %v1668
      %v1973 = vunpack.c.l.b16 %v1669
      %v1974 = vunpack.c.h.b16 %v1669
      %v1975 = vunpack.c.l.b16 %v1670
      %v1976 = vunpack.c.h.b16 %v1670
      %v1977 = vunpack.c.l.b16 %v1671
      %v1978 = vunpack.c.h.b16 %v1671
      %v1979 = vunpack.c.l.b16 %v1672
      %v1980 = vunpack.c.h.b16 %v1672
      %v1981 = vunpack.c.l.b16 %v1673
      %v1982 = vunpack.c.h.b16 %v1673
      %v1983 = vunpack.c.l.b16 %v1674
      %v1984 = vunpack.c.h.b16 %v1674
      %v1985 = vunpack.c.l.b16 %v1675
      %v1986 = vunpack.c.h.b16 %v1675
      %v1987 = vunpack.c.l.b16 %v1676
      %v1988 = vunpack.c.h.b16 %v1676
      %v1989 = vunpack.c.l.b16 %v1677
      %v1990 = vunpack.c.h.b16 %v1677
      %v1991 = vunpack.c.l.b16 %v1678
      %v1992 = vunpack.c.h.b16 %v1678
      %v1993 = vunpack.c.l.b16 %v1679
      %v1994 = vunpack.c.h.b16 %v1679
      %v1995 = vunpack.c.l.b16 %v1680
      %v1996 = vunpack.c.h.b16 %v1680
      %v1997 = vunpack.c.l.b16 %v1681
      %v1998 = vunpack.c.h.b16 %v1681
      %v1999 = vunpack.c.l.b16 %v1682
      %v2000 = vunpack.c.h.b16 %v1682
      %v2001 = vunpack.c.l.b16 %v1683
      %v2002 = vunpack.c.h.b16 %v1683
      %v2003 = vunpack.c.l.b16 %v1684
      %v2004 = vunpack.c.h.b16 %v1684
      %v2005 = vunpack.c.l.b16 %v1685
      %v2006 = vunpack.c.h.b16 %v1685
      %v2007 = vunpack.c.l.b16 %v1686
      %v2008 = vunpack.c.h.b16 %v1686
      %v2009 = vunpack.c.l.b16 %v1687
      %v2010 = vunpack.c.h.b16 %v1687
      %v2011 = vunpack.c.l.b16 %v1688
      %v2012 = vunpack.c.h.b16 %v1688
      %v2013 = vunpack.c.l.b16 %v1689
      %v2014 = vunpack.c.h.b16 %v1689
      %v2015 = vunpack.c.l.b16 %v1690
      %v2016 = vunpack.c.h.b16 %v1690
      %v2017 = vunpack.c.l.b16 %v1691
      %v2018 = vunpack.c.h.b16 %v1691
      %v2019 = vunpack.c.l.b16 %v1692
      %v2020 = vunpack.c.h.b16 %v1692
      %v2021 = vunpack.c.l.b16 %v1693
      %v2022 = vunpack.c.h.b16 %v1693
      %v2023 = vunpack.c.l.b16 %v1694
      %v2024 = vunpack.c.h.b16 %v1694
      %v2025 = vunpack.c.l.b16 %v1695
      %v2026 = vunpack.c.h.b16 %v1695
      %v2027 = vunpack.c.l.b16 %v1696
      %v2028 = vunpack.c.h.b16 %v1696
      %v2029 = vunpack.c.l.b16 %v1697
      %v2030 = vunpack.c.h.b16 %v1697
      %v2031 = vunpack.c.l.b16 %v1698
      %v2032 = vunpack.c.h.b16 %v1698
      %v2033 = vunpack.c.l.b16 %v1699
      %v2034 = vunpack.c.h.b16 %v1699
      %v2035 = vunpack.c.l.b16 %v1700
      %v2036 = vunpack.c.h.b16 %v1700
      %v2037 = vunpack.c.l.b16 %v1701
      %v2038 = vunpack.c.h.b16 %v1701
      %v2039 = vunpack.c.l.b16 %v1702
      %v2040 = vunpack.c.h.b16 %v1702
      %v2041 = vunpack.c.l.b16 %v1703
      %v2042 = vunpack.c.h.b16 %v1703
      %v2043 = vunpack.c.l.b16 %v1704
      %v2044 = vunpack.c.h.b16 %v1704
      %v2045 = vunpack.c.l.b16 %v1705
      %v2046 = vunpack.c.h.b16 %v1705
      %v2047 = vunpack.c.l.b16 %v1706
      %v2048 = vunpack.c.h.b16 %v1706
      %v2049 = vunpack.c.l.b16 %v1707
      %v2050 = vunpack.c.h.b16 %v1707
      %v2051 = vunpack.c.l.b16 %v1708
      %v2052 = vunpack.c.h.b16 %v1708
      %v2053 = vunpack.c.l.b16 %v1709
      %v2054 = vunpack.c.h.b16 %v1709
      %v2055 = vunpack.c.l.b16 %v1710
      %v2056 = vunpack.c.h.b16 %v1710
      %v2057 = vunpack.c.l.b16 %v1711
      %v2058 = vunpack.c.h.b16 %v1711
      %v2059 = vunpack.c.l.b16 %v1712
      %v2060 = vunpack.c.h.b16 %v1712
      %v2061 = vunpack.c.l.b16 %v1713
      %v2062 = vunpack.c.h.b16 %v1713
      %v2063 = vunpack.c.l.b16 %v1714
      %v2064 = vunpack.c.h.b16 %v1714
      %v2065 = vunpack.c.l.b16 %v1715
      %v2066 = vunpack.c.h.b16 %v1715
      %v2067 = vunpack.c.l.b16 %v1716
      %v2068 = vunpack.c.h.b16 %v1716
      %v2069 = vunpack.c.l.b16 %v1717
      %v2070 = vunpack.c.h.b16 %v1717
      %v2071 = vunpack.c.l.b16 %v1718
      %v2072 = vunpack.c.h.b16 %v1718
      %v2073 = vunpack.c.l.b16 %v1719
      %v2074 = vunpack.c.h.b16 %v1719
      %v2075 = vunpack.c.l.b16 %v1720
      %v2076 = vunpack.c.h.b16 %v1720
      %v2077 = vunpack.c.l.b16 %v1721
      %v2078 = vunpack.c.h.b16 %v1721
      %v2079 = vunpack.c.l.b16 %v1722
      %v2080 = vunpack.c.h.b16 %v1722
      %v2081 = vunpack.c.l.b16 %v1723
      %v2082 = vunpack.c.h.b16 %v1723
      %v2083 = vunpack.c.l.b16 %v1724
      %v2084 = vunpack.c.h.b16 %v1724
      %v2085 = vunpack.c.l.b16 %v1725
      %v2086 = vunpack.c.h.b16 %v1725
      %v2087 = vunpack.c.l.b16 %v1726
      %v2088 = vunpack.c.h.b16 %v1726
      %v2089 = vunpack.c.l.b16 %v1727
      %v2090 = vunpack.c.h.b16 %v1727
      %v2091 = vunpack.c.l.b16 %v1728
      %v2092 = vunpack.c.h.b16 %v1728
      %v2093 = vunpack.c.l.b16 %v1729
      %v2094 = vunpack.c.h.b16 %v1729
      %v2095 = vunpack.c.l.b16 %v1730
      %v2096 = vunpack.c.h.b16 %v1730
      %v2097 = vunpack.c.l.b16 %v1731
      %v2098 = vunpack.c.h.b16 %v1731
      %v2099 = vunpack.c.l.b16 %v1732
      %v2100 = vunpack.c.h.b16 %v1732
      %v2101 = vunpack.c.l.b16 %v1733
      %v2102 = vunpack.c.h.b16 %v1733
      %v2103 = vunpack.c.l.b16 %v1734
      %v2104 = vunpack.c.h.b16 %v1734
      %v2105 = vunpack.c.l.b16 %v1735
      %v2106 = vunpack.c.h.b16 %v1735
      %v2107 = vunpack.c.l.b16 %v1736
      %v2108 = vunpack.c.h.b16 %v1736
      %v2109 = vunpack.c.l.b16 %v1737
      %v2110 = vunpack.c.h.b16 %v1737
      %v2111 = vunpack.c.l.b16 %v1738
      %v2112 = vunpack.c.h.b16 %v1738
      %v2113 = vunpack.c.l.b16 %v1739
      %v2114 = vunpack.c.h.b16 %v1739
      %v2115 = vunpack.c.l.b16 %v1740
      %v2116 = vunpack.c.h.b16 %v1740
      %v2117 = vunpack.c.l.b16 %v1741
      %v2118 = vunpack.c.h.b16 %v1741
      %v2119 = vunpack.c.l.b16 %v1742
      %v2120 = vunpack.c.h.b16 %v1742
      %v2121 = vunpack.c.l.b16 %v1743
      %v2122 = vunpack.c.h.b16 %v1743
      %v2123 = vunpack.c.l.b16 %v1744
      %v2124 = vunpack.c.h.b16 %v1744
      %v2125 = vunpack.c.l.b16 %v1745
      %v2126 = vunpack.c.h.b16 %v1745
      %v2127 = vunpack.c.l.b16 %v1746
      %v2128 = vunpack.c.h.b16 %v1746
      %v2129 = vunpack.c.l.b16 %v1747
      %v2130 = vunpack.c.h.b16 %v1747
      %v2131 = vunpack.c.l.b16 %v1748
      %v2132 = vunpack.c.h.b16 %v1748
      %v2133 = vunpack.c.l.b16 %v1749
      %v2134 = vunpack.c.h.b16 %v1749
      %v2135 = vunpack.c.l.b16 %v1750
      %v2136 = vunpack.c.h.b16 %v1750
      %v2137 = vunpack.c.l.b16 %v1751
      %v2138 = vunpack.c.h.b16 %v1751
      %v2139 = vunpack.c.l.b16 %v1752
      %v2140 = vunpack.c.h.b16 %v1752
      %v2141 = vunpack.c.l.b16 %v1753
      %v2142 = vunpack.c.h.b16 %v1753
      %v2143 = vunpack.c.l.b16 %v1754
      %v2144 = vunpack.c.h.b16 %v1754
      %v2145 = vunpack.c.l.b16 %v1755
      %v2146 = vunpack.c.h.b16 %v1755
      %v2147 = vunpack.c.l.b16 %v1756
      %v2148 = vunpack.c.h.b16 %v1756
      %v2149 = vunpack.c.l.b16 %v1757
      %v2150 = vunpack.c.h.b16 %v1757
      %v2151 = vunpack.c.l.b16 %v1758
      %v2152 = vunpack.c.h.b16 %v1758
      %v2153 = vunpack.c.l.b16 %v1759
      %v2154 = vunpack.c.h.b16 %v1759
      %v2155 = vunpack.c.l.b16 %v1760
      %v2156 = vunpack.c.h.b16 %v1760
      %v2157 = vunpack.c.l.b16 %v1761
      %v2158 = vunpack.c.h.b16 %v1761
      %v2159 = vunpack.c.l.b16 %v1762
      %v2160 = vunpack.c.h.b16 %v1762
      %v2161 = vunpack.c.l.b16 %v1763
      %v2162 = vunpack.c.h.b16 %v1763
      %v2163 = vunpack.c.l.b16 %v1764
      %v2164 = vunpack.c.h.b16 %v1764
      %v2165 = vunpack.c.l.b16 %v1765
      %v2166 = vunpack.c.h.b16 %v1765
      %v2167 = vunpack.c.l.b16 %v1766
      %v2168 = vunpack.c.h.b16 %v1766
      %v2169 = vunpack.c.l.b16 %v1767
      %v2170 = vunpack.c.h.b16 %v1767
      %v2171 = vunpack.c.l.b16 %v1768
      %v2172 = vunpack.c.h.b16 %v1768
      %v2173 = vunpack.c.l.b16 %v1769
      %v2174 = vunpack.c.h.b16 %v1769
      %v2175 = vunpack.c.l.b16 %v1770
      %v2176 = vunpack.c.h.b16 %v1770
      %v2177 = vpack.c.b16 %v1925, %v1921
      %v2178 = vpack.c.b16 %v1926, %v1922
      %v2179 = vpack.c.b16 %v1927, %v1923
      %v2180 = vpack.c.b16 %v1928, %v1924
      %v2181 = vpack.c.b16 %v1933, %v1929
      %v2182 = vpack.c.b16 %v1934, %v1930
      %v2183 = vpack.c.b16 %v1935, %v1931
      %v2184 = vpack.c.b16 %v1936, %v1932
      %v2185 = vpack.c.b16 %v1941, %v1937
      %v2186 = vpack.c.b16 %v1942, %v1938
      %v2187 = vpack.c.b16 %v1943, %v1939
      %v2188 = vpack.c.b16 %v1944, %v1940
      %v2189 = vpack.c.b16 %v1949, %v1945
      %v2190 = vpack.c.b16 %v1950, %v1946
      %v2191 = vpack.c.b16 %v1951, %v1947
      %v2192 = vpack.c.b16 %v1952, %v1948
      %v2193 = vpack.c.b16 %v1957, %v1953
      %v2194 = vpack.c.b16 %v1958, %v1954
      %v2195 = vpack.c.b16 %v1959, %v1955
      %v2196 = vpack.c.b16 %v1960, %v1956
      %v2197 = vpack.c.b16 %v1965, %v1961
      %v2198 = vpack.c.b16 %v1966, %v1962
      %v2199 = vpack.c.b16 %v1967, %v1963
      %v2200 = vpack.c.b16 %v1968, %v1964
      %v2201 = vpack.c.b16 %v1973, %v1969
      %v2202 = vpack.c.b16 %v1974, %v1970
      %v2203 = vpack.c.b16 %v1975, %v1971
      %v2204 = vpack.c.b16 %v1976, %v1972
      %v2205 = vpack.c.b16 %v1981, %v1977
      %v2206 = vpack.c.b16 %v1982, %v1978
      %v2207 = vpack.c.b16 %v1983, %v1979
      %v2208 = vpack.c.b16 %v1984, %v1980
      %v2209 = vpack.c.b16 %v1989, %v1985
      %v2210 = vpack.c.b16 %v1990, %v1986
      %v2211 = vpack.c.b16 %v1991, %v1987
      %v2212 = vpack.c.b16 %v1992, %v1988
      %v2213 = vpack.c.b16 %v1997, %v1993
      %v2214 = vpack.c.b16 %v1998, %v1994
      %v2215 = vpack.c.b16 %v1999, %v1995
      %v2216 = vpack.c.b16 %v2000, %v1996
      %v2217 = vpack.c.b16 %v2005, %v2001
      %v2218 = vpack.c.b16 %v2006, %v2002
      %v2219 = vpack.c.b16 %v2007, %v2003
      %v2220 = vpack.c.b16 %v2008, %v2004
      %v2221 = vpack.c.b16 %v2013, %v2009
      %v2222 = vpack.c.b16 %v2014, %v2010
      %v2223 = vpack.c.b16 %v2015, %v2011
      %v2224 = vpack.c.b16 %v2016, %v2012
      %v2225 = vpack.c.b16 %v2021, %v2017
      %v2226 = vpack.c.b16 %v2022, %v2018
      %v2227 = vpack.c.b16 %v2023, %v2019
      %v2228 = vpack.c.b16 %v2024, %v2020
      %v2229 = vpack.c.b16 %v2029, %v2025
      %v2230 = vpack.c.b16 %v2030, %v2026
      %v2231 = vpack.c.b16 %v2031, %v2027
      %v2232 = vpack.c.b16 %v2032, %v2028
      %v2233 = vpack.c.b16 %v2037, %v2033
      %v2234 = vpack.c.b16 %v2038, %v2034
      %v2235 = vpack.c.b16 %v2039, %v2035
      %v2236 = vpack.c.b16 %v2040, %v2036
      %v2237 = vpack.c.b16 %v2045, %v2041
      %v2238 = vpack.c.b16 %v2046, %v2042
      %v2239 = vpack.c.b16 %v2047, %v2043
      %v2240 = vpack.c.b16 %v2048, %v2044
      %v2241 = vpack.c.b16 %v2053, %v2049
      %v2242 = vpack.c.b16 %v2054, %v2050
      %v2243 = vpack.c.b16 %v2055, %v2051
      %v2244 = vpack.c.b16 %v2056, %v2052
      %v2245 = vpack.c.b16 %v2061, %v2057
      %v2246 = vpack.c.b16 %v2062, %v2058
      %v2247 = vpack.c.b16 %v2063, %v2059
      %v2248 = vpack.c.b16 %v2064, %v2060
      %v2249 = vpack.c.b16 %v2069, %v2065
      %v2250 = vpack.c.b16 %v2070, %v2066
      %v2251 = vpack.c.b16 %v2071, %v2067
      %v2252 = vpack.c.b16 %v2072, %v2068
      %v2253 = vpack.c.b16 %v2077, %v2073
      %v2254 = vpack.c.b16 %v2078, %v2074
      %v2255 = vpack.c.b16 %v2079, %v2075
      %v2256 = vpack.c.b16 %v2080, %v2076
      %v2257 = vpack.c.b16 %v2085, %v2081
      %v2258 = vpack.c.b16 %v2086, %v2082
      %v2259 = vpack.c.b16 %v2087, %v2083
      %v2260 = vpack.c.b16 %v2088, %v2084
      %v2261 = vpack.c.b16 %v2093, %v2089
      %v2262 = vpack.c.b16 %v2094, %v2090
      %v2263 = vpack.c.b16 %v2095, %v2091
      %v2264 = vpack.c.b16 %v2096, %v2092
      %v2265 = vpack.c.b16 %v2101, %v2097
      %v2266 = vpack.c.b16 %v2102, %v2098
      %v2267 = vpack.c.b16 %v2103, %v2099
      %v2268 = vpack.c.b16 %v2104, %v2100
      %v2269 = vpack.c.b16 %v2109, %v2105
      %v2270 = vpack.c.b16 %v2110, %v2106
      %v2271 = vpack.c.b16 %v2111, %v2107
      %v2272 = vpack.c.b16 %v2112, %v2108
      %v2273 = vpack.c.b16 %v2117, %v2113
      %v2274 = vpack.c.b16 %v2118, %v2114
      %v2275 = vpack.c.b16 %v2119, %v2115
      %v2276 = vpack.c.b16 %v2120, %v2116
      %v2277 = vpack.c.b16 %v2125, %v2121
      %v2278 = vpack.c.b16 %v2126, %v2122
      %v2279 = vpack.c.b16 %v2127, %v2123
      %v2280 = vpack.c.b16 %v2128, %v2124
      %v2281 = vpack.c.b16 %v2133, %v2129
      %v2282 = vpack.c.b16 %v2134, %v2130
      %v2283 = vpack.c.b16 %v2135, %v2131
      %v2284 = vpack.c.b16 %v2136, %v2132
      %v2285 = vpack.c.b16 %v2141, %v2137
      %v2286 = vpack.c.b16 %v2142, %v2138
      %v2287 = vpack.c.b16 %v2143, %v2139
      %v2288 = vpack.c.b16 %v2144, %v2140
      %v2289 = vpack.c.b16 %v2149, %v2145
      %v2290 = vpack.c.b16 %v2150, %v2146
      %v2291 = vpack.c.b16 %v2151, %v2147
      %v2292 = vpack.c.b16 %v2152, %v2148
      %v2293 = vpack.c.b16 %v2157, %v2153
      %v2294 = vpack.c.b16 %v2158, %v2154
      %v2295 = vpack.c.b16 %v2159, %v2155
      %v2296 = vpack.c.b16 %v2160, %v2156
      %v2297 = vpack.c.b16 %v2165, %v2161
      %v2298 = vpack.c.b16 %v2166, %v2162
      %v2299 = vpack.c.b16 %v2167, %v2163
      %v2300 = vpack.c.b16 %v2168, %v2164
      %v2301 = vpack.c.b16 %v2173, %v2169
      %v2302 = vpack.c.b16 %v2174, %v2170
      %v2303 = vpack.c.b16 %v2175, %v2171
      %v2304 = vpack.c.b16 %v2176, %v2172
      %2433 = vmatprep.subr.bf16.mxu0 %v2206
      %2434 = vmatpush1.bf16.msra.mxu0 %v2205
      %2435 = vmatprep.subr.bf16.mxu0 %v2202
      %2436 = vmatpush1.bf16.msra.mxu0 %v2201
      %2437 = vmatprep.subr.bf16.mxu0 %v2198
      %2438 = vmatpush1.bf16.msra.mxu0 %v2197
      %2439 = vmatprep.subr.bf16.mxu0 %v2194
      %2440 = vmatpush1.bf16.msra.mxu0 %v2193
      %2441 = vmatprep.subr.bf16.mxu0 %v2190
      %2442 = vmatpush1.bf16.msra.mxu0 %v2189
      %2443 = vmatprep.subr.bf16.mxu0 %v2186
      %2444 = vmatpush1.bf16.msra.mxu0 %v2185
      %2445 = vmatprep.subr.bf16.mxu0 %v2182
      %2446 = vmatpush1.bf16.msra.mxu0 %v2181
      %2447 = vmatprep.subr.bf16.mxu0 %v2178
      %2448 = vmatpush1.bf16.msra.mxu0 %v2177
      %2449 = vmatprep.subr.bf16.mxu0 %v2238
      %2450 = vmatpush2.bf16.msra.mxu0 %v2237
      %2451 = vmatprep.subr.bf16.mxu0 %v2234
      %2452 = vmatpush2.bf16.msra.mxu0 %v2233
      %2453 = vmatprep.subr.bf16.mxu0 %v2230
      %2454 = vmatpush2.bf16.msra.mxu0 %v2229
      %2455 = vmatprep.subr.bf16.mxu0 %v2226
      %2456 = vmatpush2.bf16.msra.mxu0 %v2225
      %2457 = vmatprep.subr.bf16.mxu0 %v2222
      %2458 = vmatpush2.bf16.msra.mxu0 %v2221
      %2459 = vmatprep.subr.bf16.mxu0 %v2218
      %2460 = vmatpush2.bf16.msra.mxu0 %v2217
      %2461 = vmatprep.subr.bf16.mxu0 %v2214
      %2462 = vmatpush2.bf16.msra.mxu0 %v2213
      %2463 = vmatprep.subr.bf16.mxu0 %v2210
      %2464 = vmatpush2.bf16.msra.mxu0 %v2209
      %2465 = vmatprep.mubr.bf16.mxu0 %v1640
      %2466 = vmatmul.mubr.bf16.gmra.mxu0 %v1639
      %v2467 = vpop.f32.mrf.mxu0
      %v2468 = vadd.f32 %v1776, %v2467
      %v2469 = vpop.f32.mrf.mxu0
      %v2470 = vadd.f32 %v1780, %v2469
      %v2471 = vpop.f32.mrf.mxu0
      %v2472 = vadd.f32 %v1776, %v2471
      %v2473 = vpop.f32.mrf.mxu0
      %v2474 = vadd.f32 %v1780, %v2473
      %2475 = vdwg.mxu0
      %2476 = vmatprep.subr.bf16.mxu0 %v2270
      %2477 = vmatpush1.bf16.msra.mxu0 %v2269
      %2478 = vmatprep.subr.bf16.mxu0 %v2266
      %2479 = vmatpush1.bf16.msra.mxu0 %v2265
      %2480 = vmatprep.subr.bf16.mxu0 %v2262
      %2481 = vmatpush1.bf16.msra.mxu0 %v2261
      %2482 = vmatprep.subr.bf16.mxu0 %v2258
      %2483 = vmatpush1.bf16.msra.mxu0 %v2257
      %2484 = vmatprep.subr.bf16.mxu0 %v2254
      %2485 = vmatpush1.bf16.msra.mxu0 %v2253
      %2486 = vmatprep.subr.bf16.mxu0 %v2250
      %2487 = vmatpush1.bf16.msra.mxu0 %v2249
      %2488 = vmatprep.subr.bf16.mxu0 %v2246
      %2489 = vmatpush1.bf16.msra.mxu0 %v2245
      %2490 = vmatprep.subr.bf16.mxu0 %v2242
      %2491 = vmatpush1.bf16.msra.mxu0 %v2241
      %2492 = vmatprep.subr.bf16.mxu0 %v2302
      %2493 = vmatpush2.bf16.msra.mxu0 %v2301
      %2494 = vmatprep.subr.bf16.mxu0 %v2298
      %2495 = vmatpush2.bf16.msra.mxu0 %v2297
      %2496 = vmatprep.subr.bf16.mxu0 %v2294
      %2497 = vmatpush2.bf16.msra.mxu0 %v2293
      %2498 = vmatprep.subr.bf16.mxu0 %v2290
      %2499 = vmatpush2.bf16.msra.mxu0 %v2289
      %2500 = vmatprep.subr.bf16.mxu0 %v2286
      %2501 = vmatpush2.bf16.msra.mxu0 %v2285
      %2502 = vmatprep.subr.bf16.mxu0 %v2282
      %2503 = vmatpush2.bf16.msra.mxu0 %v2281
      %2504 = vmatprep.subr.bf16.mxu0 %v2278
      %2505 = vmatpush2.bf16.msra.mxu0 %v2277
      %2506 = vmatprep.subr.bf16.mxu0 %v2274
      %2507 = vmatpush2.bf16.msra.mxu0 %v2273
      %2508 = vmatprep.mubr.bf16.mxu0 %v1642
      %2509 = vmatmul.mubr.bf16.gmra.mxu0 %v1641
      %v2510 = vpop.f32.mrf.mxu0
      %v2511 = vadd.f32 %v2468, %v2510
      %v2512 = vpop.f32.mrf.mxu0
      %v2513 = vadd.f32 %v2470, %v2512
      %v2514 = vpop.f32.mrf.mxu0
      %v2515 = vadd.f32 %v2472, %v2514
      %v2516 = vpop.f32.mrf.mxu0
      %v2517 = vadd.f32 %v2474, %v2516
      %2518 = vdwg.mxu0
      %2519 = vmatprep.subr.bf16.mxu0 %v2208
      %2520 = vmatpush1.bf16.msra.mxu0 %v2207
      %2521 = vmatprep.subr.bf16.mxu0 %v2204
      %2522 = vmatpush1.bf16.msra.mxu0 %v2203
      %2523 = vmatprep.subr.bf16.mxu0 %v2200
      %2524 = vmatpush1.bf16.msra.mxu0 %v2199
      %2525 = vmatprep.subr.bf16.mxu0 %v2196
      %2526 = vmatpush1.bf16.msra.mxu0 %v2195
      %2527 = vmatprep.subr.bf16.mxu0 %v2192
      %2528 = vmatpush1.bf16.msra.mxu0 %v2191
      %2529 = vmatprep.subr.bf16.mxu0 %v2188
      %2530 = vmatpush1.bf16.msra.mxu0 %v2187
      %2531 = vmatprep.subr.bf16.mxu0 %v2184
      %2532 = vmatpush1.bf16.msra.mxu0 %v2183
      %2533 = vmatprep.subr.bf16.mxu0 %v2180
      %2534 = vmatpush1.bf16.msra.mxu0 %v2179
      %2535 = vmatprep.subr.bf16.mxu0 %v2240
      %2536 = vmatpush2.bf16.msra.mxu0 %v2239
      %2537 = vmatprep.subr.bf16.mxu0 %v2236
      %2538 = vmatpush2.bf16.msra.mxu0 %v2235
      %2539 = vmatprep.subr.bf16.mxu0 %v2232
      %2540 = vmatpush2.bf16.msra.mxu0 %v2231
      %2541 = vmatprep.subr.bf16.mxu0 %v2228
      %2542 = vmatpush2.bf16.msra.mxu0 %v2227
      %2543 = vmatprep.subr.bf16.mxu0 %v2224
      %2544 = vmatpush2.bf16.msra.mxu0 %v2223
      %2545 = vmatprep.subr.bf16.mxu0 %v2220
      %2546 = vmatpush2.bf16.msra.mxu0 %v2219
      %2547 = vmatprep.subr.bf16.mxu0 %v2216
      %2548 = vmatpush2.bf16.msra.mxu0 %v2215
      %2549 = vmatprep.subr.bf16.mxu0 %v2212
      %2550 = vmatpush2.bf16.msra.mxu0 %v2211
      %2551 = vmatprep.mubr.bf16.mxu0 %v1640
      %2552 = vmatmul.mubr.bf16.gmra.mxu0 %v1639
      %v2553 = vpop.f32.mrf.mxu0
      %v2554 = vadd.f32 %v1784, %v2553
      %v2555 = vpop.f32.mrf.mxu0
      %v2556 = vadd.f32 %v1788, %v2555
      %v2557 = vpop.f32.mrf.mxu0
      %v2558 = vadd.f32 %v1784, %v2557
      %v2559 = vpop.f32.mrf.mxu0
      %v2560 = vadd.f32 %v1788, %v2559
      %2561 = vdwg.mxu0
      %2562 = vmatprep.subr.bf16.mxu0 %v2272
      %2563 = vmatpush1.bf16.msra.mxu0 %v2271
      %2564 = vmatprep.subr.bf16.mxu0 %v2268
      %2565 = vmatpush1.bf16.msra.mxu0 %v2267
      %2566 = vmatprep.subr.bf16.mxu0 %v2264
      %2567 = vmatpush1.bf16.msra.mxu0 %v2263
      %2568 = vmatprep.subr.bf16.mxu0 %v2260
      %2569 = vmatpush1.bf16.msra.mxu0 %v2259
      %2570 = vmatprep.subr.bf16.mxu0 %v2256
      %2571 = vmatpush1.bf16.msra.mxu0 %v2255
      %2572 = vmatprep.subr.bf16.mxu0 %v2252
      %2573 = vmatpush1.bf16.msra.mxu0 %v2251
      %2574 = vmatprep.subr.bf16.mxu0 %v2248
      %2575 = vmatpush1.bf16.msra.mxu0 %v2247
      %2576 = vmatprep.subr.bf16.mxu0 %v2244
      %2577 = vmatpush1.bf16.msra.mxu0 %v2243
      %2578 = vmatprep.subr.bf16.mxu0 %v2304
      %2579 = vmatpush2.bf16.msra.mxu0 %v2303
      %2580 = vmatprep.subr.bf16.mxu0 %v2300
      %2581 = vmatpush2.bf16.msra.mxu0 %v2299
      %2582 = vmatprep.subr.bf16.mxu0 %v2296
      %2583 = vmatpush2.bf16.msra.mxu0 %v2295
      %2584 = vmatprep.subr.bf16.mxu0 %v2292
      %2585 = vmatpush2.bf16.msra.mxu0 %v2291
      %2586 = vmatprep.subr.bf16.mxu0 %v2288
      %2587 = vmatpush2.bf16.msra.mxu0 %v2287
      %2588 = vmatprep.subr.bf16.mxu0 %v2284
      %2589 = vmatpush2.bf16.msra.mxu0 %v2283
      %2590 = vmatprep.subr.bf16.mxu0 %v2280
      %2591 = vmatpush2.bf16.msra.mxu0 %v2279
      %2592 = vmatprep.subr.bf16.mxu0 %v2276
      %2593 = vmatpush2.bf16.msra.mxu0 %v2275
      %2594 = vmatprep.mubr.bf16.mxu0 %v1642
      %2595 = vmatmul.mubr.bf16.gmra.mxu0 %v1641
      %v2596 = vpop.f32.mrf.mxu0
      %v2597 = vadd.f32 %v2554, %v2596
      %v2598 = vpop.f32.mrf.mxu0
      %v2599 = vadd.f32 %v2556, %v2598
      %v2600 = vpop.f32.mrf.mxu0
      %v2601 = vadd.f32 %v2558, %v2600
      %v2602 = vpop.f32.mrf.mxu0
      %v2603 = vadd.f32 %v2560, %v2602
      %2604 = vdwg.mxu0
      %v2605 = vmax.f32 %v2511, 0.0
      %v2606 = vmax.f32 %v2513, 0.0
      %v2607 = vmax.f32 %v2597, 0.0
      %v2608 = vmax.f32 %v2599, 0.0
      %v2609 = vmax.f32 %v2515, 0.0
      %v2610 = vmax.f32 %v2517, 0.0
      %v2611 = vmax.f32 %v2601, 0.0
      %v2612 = vmax.f32 %v2603, 0.0
      %v2613 = vpack.c.bf16 %v2609, %v2605
      %v2614 = vpack.c.bf16 %v2610, %v2606
      %v2615 = vpack.c.bf16 %v2611, %v2607
      %v2616 = vpack.c.bf16 %v2612, %v2608
      %v2617 = vld [vmem:[#allocation11] sm:$0xf]
      %v2618 = vld [vmem:[#allocation11 + $0x4] sm:$0xf]
      %v2619 = vld [vmem:[#allocation11 + $0x8] sm:$0xf]
      %v2620 = vld [vmem:[#allocation11 + $0xc] sm:$0xf]
      %v2621 = vld [vmem:[#allocation11 + $0x10] sm:$0xf]
      %v2622 = vld [vmem:[#allocation11 + $0x14] sm:$0xf]
      %v2623 = vld [vmem:[#allocation11 + $0x18] sm:$0xf]
      %v2624 = vld [vmem:[#allocation11 + $0x1c] sm:$0xf]
      %v2625 = vld [vmem:[#allocation11 + $0x20] sm:$0xf]
      %v2626 = vld [vmem:[#allocation11 + $0x24] sm:$0xf]
      %v2627 = vld [vmem:[#allocation11 + $0x28] sm:$0xf]
      %v2628 = vld [vmem:[#allocation11 + $0x2c] sm:$0xf]
      %v2629 = vld [vmem:[#allocation11 + $0x30] sm:$0xf]
      %v2630 = vld [vmem:[#allocation11 + $0x34] sm:$0xf]
      %v2631 = vld [vmem:[#allocation11 + $0x38] sm:$0xf]
      %v2632 = vld [vmem:[#allocation11 + $0x3c] sm:$0xf]
      %v2633 = vld [vmem:[#allocation11 + $0x40] sm:$0xf]
      %v2634 = vld [vmem:[#allocation11 + $0x44] sm:$0xf]
      %v2635 = vld [vmem:[#allocation11 + $0x48] sm:$0xf]
      %v2636 = vld [vmem:[#allocation11 + $0x4c] sm:$0xf]
      %v2637 = vld [vmem:[#allocation11 + $0x50] sm:$0xf]
      %v2638 = vld [vmem:[#allocation11 + $0x54] sm:$0xf]
      %v2639 = vld [vmem:[#allocation11 + $0x58] sm:$0xf]
      %v2640 = vld [vmem:[#allocation11 + $0x5c] sm:$0xf]
      %v2641 = vld [vmem:[#allocation11 + $0x60] sm:$0xf]
      %v2642 = vld [vmem:[#allocation11 + $0x64] sm:$0xf]
      %v2643 = vld [vmem:[#allocation11 + $0x68] sm:$0xf]
      %v2644 = vld [vmem:[#allocation11 + $0x6c] sm:$0xf]
      %v2645 = vld [vmem:[#allocation11 + $0x70] sm:$0xf]
      %v2646 = vld [vmem:[#allocation11 + $0x74] sm:$0xf]
      %v2647 = vld [vmem:[#allocation11 + $0x78] sm:$0xf]
      %v2648 = vld [vmem:[#allocation11 + $0x7c] sm:$0xf]
      %v2649 = vld [vmem:[#allocation11 + $0x80] sm:$0xf]
      %v2650 = vld [vmem:[#allocation11 + $0x84] sm:$0xf]
      %v2651 = vld [vmem:[#allocation11 + $0x88] sm:$0xf]
      %v2652 = vld [vmem:[#allocation11 + $0x8c] sm:$0xf]
      %v2653 = vld [vmem:[#allocation11 + $0x90] sm:$0xf]
      %v2654 = vld [vmem:[#allocation11 + $0x94] sm:$0xf]
      %v2655 = vld [vmem:[#allocation11 + $0x98] sm:$0xf]
      %v2656 = vld [vmem:[#allocation11 + $0x9c] sm:$0xf]
      %v2657 = vld [vmem:[#allocation11 + $0xa0] sm:$0xf]
      %v2658 = vld [vmem:[#allocation11 + $0xa4] sm:$0xf]
      %v2659 = vld [vmem:[#allocation11 + $0xa8] sm:$0xf]
      %v2660 = vld [vmem:[#allocation11 + $0xac] sm:$0xf]
      %v2661 = vld [vmem:[#allocation11 + $0xb0] sm:$0xf]
      %v2662 = vld [vmem:[#allocation11 + $0xb4] sm:$0xf]
      %v2663 = vld [vmem:[#allocation11 + $0xb8] sm:$0xf]
      %v2664 = vld [vmem:[#allocation11 + $0xbc] sm:$0xf]
      %v2665 = vld [vmem:[#allocation11 + $0xc0] sm:$0xf]
      %v2666 = vld [vmem:[#allocation11 + $0xc4] sm:$0xf]
      %v2667 = vld [vmem:[#allocation11 + $0xc8] sm:$0xf]
      %v2668 = vld [vmem:[#allocation11 + $0xcc] sm:$0xf]
      %v2669 = vld [vmem:[#allocation11 + $0xd0] sm:$0xf]
      %v2670 = vld [vmem:[#allocation11 + $0xd4] sm:$0xf]
      %v2671 = vld [vmem:[#allocation11 + $0xd8] sm:$0xf]
      %v2672 = vld [vmem:[#allocation11 + $0xdc] sm:$0xf]
      %v2673 = vld [vmem:[#allocation11 + $0xe0] sm:$0xf]
      %v2674 = vld [vmem:[#allocation11 + $0xe4] sm:$0xf]
      %v2675 = vld [vmem:[#allocation11 + $0xe8] sm:$0xf]
      %v2676 = vld [vmem:[#allocation11 + $0xec] sm:$0xf]
      %v2677 = vld [vmem:[#allocation11 + $0xf0] sm:$0xf]
      %v2678 = vld [vmem:[#allocation11 + $0xf4] sm:$0xf]
      %v2679 = vld [vmem:[#allocation11 + $0xf8] sm:$0xf]
      %v2680 = vld [vmem:[#allocation11 + $0xfc] sm:$0xf]
      %v2681 = vld [vmem:[%s6] sm:$0x1]
      %v2683 = vlaneseq
      %v2684 = vshrl.u32 %v2683, 7
      %v2685 = vsub.s32 0, %v2684
      %v2686 = vrot.slane %v2681, %v2685
      %v2752 = vunpack.c.l.b16 %v2617
      %v2753 = vunpack.c.l.b16 %v2618
      %v2754 = vunpack.c.l.b16 %v2619
      %v2755 = vunpack.c.l.b16 %v2620
      %v2756 = vunpack.c.l.b16 %v2621
      %v2757 = vunpack.c.l.b16 %v2622
      %v2758 = vunpack.c.l.b16 %v2623
      %v2759 = vunpack.c.l.b16 %v2624
      %v2760 = vunpack.c.l.b16 %v2625
      %v2761 = vunpack.c.l.b16 %v2626
      %v2762 = vunpack.c.l.b16 %v2627
      %v2763 = vunpack.c.l.b16 %v2628
      %v2764 = vunpack.c.l.b16 %v2629
      %v2765 = vunpack.c.l.b16 %v2630
      %v2766 = vunpack.c.l.b16 %v2631
      %v2767 = vunpack.c.l.b16 %v2632
      %v2768 = vunpack.c.l.b16 %v2633
      %v2769 = vunpack.c.l.b16 %v2634
      %v2770 = vunpack.c.l.b16 %v2635
      %v2771 = vunpack.c.l.b16 %v2636
      %v2772 = vunpack.c.l.b16 %v2637
      %v2773 = vunpack.c.l.b16 %v2638
      %v2774 = vunpack.c.l.b16 %v2639
      %v2775 = vunpack.c.l.b16 %v2640
      %v2776 = vunpack.c.l.b16 %v2641
      %v2777 = vunpack.c.l.b16 %v2642
      %v2778 = vunpack.c.l.b16 %v2643
      %v2779 = vunpack.c.l.b16 %v2644
      %v2780 = vunpack.c.l.b16 %v2645
      %v2781 = vunpack.c.l.b16 %v2646
      %v2782 = vunpack.c.l.b16 %v2647
      %v2783 = vunpack.c.l.b16 %v2648
      %v2784 = vunpack.c.l.b16 %v2649
      %v2785 = vunpack.c.l.b16 %v2650
      %v2786 = vunpack.c.l.b16 %v2651
      %v2787 = vunpack.c.l.b16 %v2652
      %v2788 = vunpack.c.l.b16 %v2653
      %v2789 = vunpack.c.l.b16 %v2654
      %v2790 = vunpack.c.l.b16 %v2655
      %v2791 = vunpack.c.l.b16 %v2656
      %v2792 = vunpack.c.l.b16 %v2657
      %v2793 = vunpack.c.l.b16 %v2658
      %v2794 = vunpack.c.l.b16 %v2659
      %v2795 = vunpack.c.l.b16 %v2660
      %v2796 = vunpack.c.l.b16 %v2661
      %v2797 = vunpack.c.l.b16 %v2662
      %v2798 = vunpack.c.l.b16 %v2663
      %v2799 = vunpack.c.l.b16 %v2664
      %v2800 = vunpack.c.l.b16 %v2665
      %v2801 = vunpack.c.l.b16 %v2666
      %v2802 = vunpack.c.l.b16 %v2667
      %v2803 = vunpack.c.l.b16 %v2668
      %v2804 = vunpack.c.l.b16 %v2669
      %v2805 = vunpack.c.l.b16 %v2670
      %v2806 = vunpack.c.l.b16 %v2671
      %v2807 = vunpack.c.l.b16 %v2672
      %v2808 = vunpack.c.l.b16 %v2673
      %v2809 = vunpack.c.l.b16 %v2674
      %v2810 = vunpack.c.l.b16 %v2675
      %v2811 = vunpack.c.l.b16 %v2676
      %v2812 = vunpack.c.l.b16 %v2677
      %v2813 = vunpack.c.l.b16 %v2678
      %v2814 = vunpack.c.l.b16 %v2679
      %v2815 = vunpack.c.l.b16 %v2680
      %v2816 = vpack.c.b16 %v2753, %v2752
      %v2817 = vpack.c.b16 %v2755, %v2754
      %v2818 = vpack.c.b16 %v2757, %v2756
      %v2819 = vpack.c.b16 %v2759, %v2758
      %v2820 = vpack.c.b16 %v2761, %v2760
      %v2821 = vpack.c.b16 %v2763, %v2762
      %v2822 = vpack.c.b16 %v2765, %v2764
      %v2823 = vpack.c.b16 %v2767, %v2766
      %v2824 = vpack.c.b16 %v2769, %v2768
      %v2825 = vpack.c.b16 %v2771, %v2770
      %v2826 = vpack.c.b16 %v2773, %v2772
      %v2827 = vpack.c.b16 %v2775, %v2774
      %v2828 = vpack.c.b16 %v2777, %v2776
      %v2829 = vpack.c.b16 %v2779, %v2778
      %v2830 = vpack.c.b16 %v2781, %v2780
      %v2831 = vpack.c.b16 %v2783, %v2782
      %v2832 = vpack.c.b16 %v2785, %v2784
      %v2833 = vpack.c.b16 %v2787, %v2786
      %v2834 = vpack.c.b16 %v2789, %v2788
      %v2835 = vpack.c.b16 %v2791, %v2790
      %v2836 = vpack.c.b16 %v2793, %v2792
      %v2837 = vpack.c.b16 %v2795, %v2794
      %v2838 = vpack.c.b16 %v2797, %v2796
      %v2839 = vpack.c.b16 %v2799, %v2798
      %v2840 = vpack.c.b16 %v2801, %v2800
      %v2841 = vpack.c.b16 %v2803, %v2802
      %v2842 = vpack.c.b16 %v2805, %v2804
      %v2843 = vpack.c.b16 %v2807, %v2806
      %v2844 = vpack.c.b16 %v2809, %v2808
      %v2845 = vpack.c.b16 %v2811, %v2810
      %v2846 = vpack.c.b16 %v2813, %v2812
      %v2847 = vpack.c.b16 %v2815, %v2814
      %2880 = vmatprep.subr.bf16.mxu0 0
      %2881 = vmatpush1.bf16.msra.mxu0 %v2823
      %2882 = vmatprep.subr.bf16.mxu0 0
      %2883 = vmatpush1.bf16.msra.mxu0 %v2822
      %2884 = vmatprep.subr.bf16.mxu0 0
      %2885 = vmatpush1.bf16.msra.mxu0 %v2821
      %2886 = vmatprep.subr.bf16.mxu0 0
      %2887 = vmatpush1.bf16.msra.mxu0 %v2820
      %2888 = vmatprep.subr.bf16.mxu0 0
      %2889 = vmatpush1.bf16.msra.mxu0 %v2819
      %2890 = vmatprep.subr.bf16.mxu0 0
      %2891 = vmatpush1.bf16.msra.mxu0 %v2818
      %2892 = vmatprep.subr.bf16.mxu0 0
      %2893 = vmatpush1.bf16.msra.mxu0 %v2817
      %2894 = vmatprep.subr.bf16.mxu0 0
      %2895 = vmatpush1.bf16.msra.mxu0 %v2816
      %2896 = vmatprep.subr.bf16.mxu0 0
      %2897 = vmatpush2.bf16.msra.mxu0 %v2831
      %2898 = vmatprep.subr.bf16.mxu0 0
      %2899 = vmatpush2.bf16.msra.mxu0 %v2830
      %2900 = vmatprep.subr.bf16.mxu0 0
      %2901 = vmatpush2.bf16.msra.mxu0 %v2829
      %2902 = vmatprep.subr.bf16.mxu0 0
      %2903 = vmatpush2.bf16.msra.mxu0 %v2828
      %2904 = vmatprep.subr.bf16.mxu0 0
      %2905 = vmatpush2.bf16.msra.mxu0 %v2827
      %2906 = vmatprep.subr.bf16.mxu0 0
      %2907 = vmatpush2.bf16.msra.mxu0 %v2826
      %2908 = vmatprep.subr.bf16.mxu0 0
      %2909 = vmatpush2.bf16.msra.mxu0 %v2825
      %2910 = vmatprep.subr.bf16.mxu0 0
      %2911 = vmatpush2.bf16.msra.mxu0 %v2824
      %2912 = vmatprep.mubr.bf16.mxu0 %v2614
      %2913 = vmatmul.mubr.bf16.gmra.mxu0 %v2613
      %v2914 = vpop.f32.mrf.mxu0
      %v2915 = vadd.f32 %v2686, %v2914
      %v2916 = vpop.f32.mrf.mxu0
      %v2917 = vpop.f32.mrf.mxu0
      %v2918 = vadd.f32 %v2686, %v2917
      %v2919 = vpop.f32.mrf.mxu0
      %2920 = vdwg.mxu0
      %2921 = vmatprep.subr.bf16.mxu0 0
      %2922 = vmatpush1.bf16.msra.mxu0 %v2839
      %2923 = vmatprep.subr.bf16.mxu0 0
      %2924 = vmatpush1.bf16.msra.mxu0 %v2838
      %2925 = vmatprep.subr.bf16.mxu0 0
      %2926 = vmatpush1.bf16.msra.mxu0 %v2837
      %2927 = vmatprep.subr.bf16.mxu0 0
      %2928 = vmatpush1.bf16.msra.mxu0 %v2836
      %2929 = vmatprep.subr.bf16.mxu0 0
      %2930 = vmatpush1.bf16.msra.mxu0 %v2835
      %2931 = vmatprep.subr.bf16.mxu0 0
      %2932 = vmatpush1.bf16.msra.mxu0 %v2834
      %2933 = vmatprep.subr.bf16.mxu0 0
      %2934 = vmatpush1.bf16.msra.mxu0 %v2833
      %2935 = vmatprep.subr.bf16.mxu0 0
      %2936 = vmatpush1.bf16.msra.mxu0 %v2832
      %2937 = vmatprep.subr.bf16.mxu0 0
      %2938 = vmatpush2.bf16.msra.mxu0 %v2847
      %2939 = vmatprep.subr.bf16.mxu0 0
      %2940 = vmatpush2.bf16.msra.mxu0 %v2846
      %2941 = vmatprep.subr.bf16.mxu0 0
      %2942 = vmatpush2.bf16.msra.mxu0 %v2845
      %2943 = vmatprep.subr.bf16.mxu0 0
      %2944 = vmatpush2.bf16.msra.mxu0 %v2844
      %2945 = vmatprep.subr.bf16.mxu0 0
      %2946 = vmatpush2.bf16.msra.mxu0 %v2843
      %2947 = vmatprep.subr.bf16.mxu0 0
      %2948 = vmatpush2.bf16.msra.mxu0 %v2842
      %2949 = vmatprep.subr.bf16.mxu0 0
      %2950 = vmatpush2.bf16.msra.mxu0 %v2841
      %2951 = vmatprep.subr.bf16.mxu0 0
      %2952 = vmatpush2.bf16.msra.mxu0 %v2840
      %2953 = vmatprep.mubr.bf16.mxu0 %v2616
      %2954 = vmatmul.mubr.bf16.gmra.mxu0 %v2615
      %v2955 = vpop.f32.mrf.mxu0
      %v2956 = vadd.f32 %v2915, %v2955
      %v2957 = vpop.f32.mrf.mxu0
      %v2958 = vpop.f32.mrf.mxu0
      %v2959 = vadd.f32 %v2918, %v2958
      %v2960 = vpop.f32.mrf.mxu0
      %2961 = vdwg.mxu0
      %2962 = vst [vmem:[#allocation12] sm:$0xff] %v2956
      %2963 = vst [vmem:[#allocation12 + $0x8] sm:$0xff] %v2959
    $region57: #{tpu_custom_call.1} parent=1 // pred_fallthru
      _
    // Predicated region
    $region58: #{tpu_custom_call.1} parent=1 // pred_check
      _
    $region59: #{tpu_custom_call.1} parent=1 // pred_check_branch
      %2965 = sbr.rel (0) target = $region61
    $region60: #{tpu_custom_call.1} parent=1 // pred_region
      %s2967 = ssub.s32 256, 256
      %2968 = vsyncadd [#allocation5], %s2967
      %s2969 = sshll.u32 [#allocation12], 4
      %s2970 = int_to_ptr.vmem [resolvable:$true] %s2969
      %2975 = dma.vmem_to_hbm [thread:$0]  %s2970, 256, %s7, [#allocation5], 128, 128, 8
    $region61: #{tpu_custom_call.1} parent=1 // pred_fallthru
      _
    // Predicated region
    $region62: #{tpu_custom_call.1} parent=1 // pred_check
      _
    $region63: #{tpu_custom_call.1} parent=1 // pred_check_branch
      %2977 = sbr.rel (0) target = $region65
    $region64: #{tpu_custom_call.1} parent=1 // pred_region
      %2978 = dma.done [#allocation5], 256
    $region65: #{tpu_custom_call.1} parent=1 // pred_fallthru
      _
    %2979 = vsyncpa [#allocation4], 1
    %2980 = vsyncpa [#allocation7], 1
    %2981 = vsyncpa [#allocation10], 1
    %2982 = vsyncpa [#allocation5], 1

</llo_original>
